<compile_context>
chip_gen: v7x
topology: tpu7x:2x2x1
jax: 0.10.0
libtpu: 0.0.40
codegen_flags: <defaults>
</compile_context>

<pallas_src>
import functools

import jax
import jax.numpy as jnp
from jax.experimental import pallas as pl
from jax.experimental.pallas import tpu as pltpu

_MARGIN = 16.0      # hard-coded in the PyTorch module: (16 - dist).clamp(min=0)
_PAD_BSQ = 1e9      # ||b_i||^2 sentinel for padded batch rows -> relu(16 - dist) == 0


def _round_up(x, m):
    return (x + m - 1) // m * m


def _detect_num_tensorcores():
    """2 on v7x (two TensorCores per chip), 1 on v5e / v6e / unknown."""
    try:
        kind = jax.devices()[0].device_kind.lower()
    except Exception:
        return 1
    return 2 if "7" in kind else 1


def _dsh_loss_kernel(b_ref, bsq_ref, bmask_ref, B_ref, Tmask_ref,
                     out_ref, acc_ref, *, steps_per_core):
    """One grid step: accumulate a (batch_p, tile_n) pairwise-loss tile."""
    j = pl.program_id(1)

    @pl.when(j == 0)
    def _init():
        acc_ref[...] = jnp.zeros_like(acc_ref)

    b = b_ref[...]                                   # (batch_p, C)   bf16 sign codes
    Bi = B_ref[...]                                  # (C, tile_n)    int8 {-1, 0, +1}
    Bm = Bi.astype(jnp.bfloat16)                     # MXU operand (portable bf16)
    Bf = Bi.astype(jnp.float32)                      # for the sublane (XLU) reduce

    # dist[i, j] = ||b_i||^2 + ||B_j||^2 - 2 <b_i, B_j>   (all terms exact integers)
    cross = jnp.dot(b, Bm, preferred_element_type=jnp.float32)     # (batch_p, tile_n)
    bsq_j = jnp.sum(Bf * Bf, axis=0, keepdims=True)                # (1, tile_n)
    dist = bsq_ref[...] + bsq_j - 2.0 * cross

    # dissimilar pair <=> no shared label bit (== "one-hot inner product == 0")
    dissim = (bmask_ref[...] & Tmask_ref[...]) == 0                # (batch_p, tile_n)

    loss = 0.5 * jnp.where(dissim, jnp.maximum(_MARGIN - dist, 0.0), dist)

    # lane-parallel accumulation; cross-lane reduction deferred to the epilogue
    acc_ref[...] = acc_ref[...] + loss

    @pl.when(j == steps_per_core - 1)
    def _finalize():
        out_ref[...] = jnp.sum(acc_ref[...]) * jnp.ones((8, 128), jnp.float32)


def make_dsh_loss(num_train, bit=8, numclasses=8, *, tile_n=8192, num_cores=None):
    """Functional equivalent of the PyTorch dshloss module.

    Returns (init_state, forward) where
    forward(output, batch_index, train_label_onehot, state) -> (loss1, loss2, new_state).
    """
    assert bit <= 31, "label bitmask is packed into int32"
    # TODO(synk): bit > 31 needs multi-word label masks (or the one-hot matmul path).

    if num_cores is None:
        num_cores = _detect_num_tensorcores()

    # Large lane-dense tiles (perf review), but never larger than the padded
    # per-core extent so tiny problems don't stream pure padding.
    per_core = -(-num_train // num_cores)
    tile_n = max(512, min(tile_n, _round_up(per_core, 512)))
    n_pad = _round_up(num_train, tile_n * num_cores)
    steps_per_core = n_pad // (tile_n * num_cores)

    # Size-1 leading axis on 1-TC chips == collapsed (no extra epilogues).
    dim_sems = ("parallel", "arbitrary")

    def init_state():
        return {
            # stored sign codes, transposed & int8: B[:, j] = code of train sample j
            "B": jnp.zeros((numclasses, n_pad), jnp.int8),
            # packed label bitmasks of the stored samples (0 == never set / padded)
            "Tmask": jnp.zeros((1, n_pad), jnp.int32),
            # running sum_{j < num_train} |B[j] - 1|   (all-zero init => 1 per entry)
            "reg_sum": jnp.float32(num_train * numclasses),
        }

    @functools.partial(jax.jit, donate_argnums=(3,))
    def forward(output, batch_index, train_label_onehot, state):
        batch = output.shape[0]
        assert output.shape[1] == numclasses
        batch_p = _round_up(batch, 8)

        b = jnp.sign(output).astype(jnp.float32)                       # (batch, C)
        bsq = jnp.sum(b * b, axis=1)                                   # (batch,)
        weights = jnp.int32(1) << jnp.arange(bit, dtype=jnp.int32)
        bmask = jnp.sum((train_label_onehot != 0).astype(jnp.int32) * weights[None, :],
                        axis=1).astype(jnp.int32)                      # (batch,)

        # ---- incremental |B - 1| regularizer update (touches only batch columns) ----
        # TODO(synk): assumes batch_index holds unique indices (sampling without
        # replacement); duplicates would also make the .at[].set scatter ambiguous.
        old = state["B"][:, batch_index].astype(jnp.float32)           # (C, batch)
        reg_sum = (state["reg_sum"]
                   + jnp.sum(jnp.abs(b - 1.0))
                   - jnp.sum(jnp.abs(old - 1.0)))

        # ---- state scatter update (donated buffers -> in-place on TPU) ----
        B_new = state["B"].at[:, batch_index].set(b.T.astype(jnp.int8))
        Tmask_new = state["Tmask"].at[0, batch_index].set(bmask)

        # ---- pad the tiny resident batch-side operands to a sublane multiple ----
        pad = batch_p - batch
        b_p = jnp.pad(b, ((0, pad), (0, 0))).astype(jnp.bfloat16)      # (batch_p, C)
        # padded rows get a huge ||b_i||^2 sentinel: every one of their pair terms
        # falls in the hinge branch and clamps to exactly 0 (no in-kernel row mask)
        bsq_p = jnp.pad(bsq, (0, pad), constant_values=_PAD_BSQ)[:, None]
        bmask_p = jnp.pad(bmask, (0, pad))[:, None]

        kernel = functools.partial(_dsh_loss_kernel, steps_per_core=steps_per_core)

        def resident(p, j):
            return (0, 0)

        def tile(p, j):
            return (0, p * steps_per_core + j)

        out = pl.pallas_call(
            kernel,
            out_shape=jax.ShapeDtypeStruct((num_cores * 8, 128), jnp.float32),
            grid_spec=pltpu.PrefetchScalarGridSpec(
                num_scalar_prefetch=0,
                grid=(num_cores, steps_per_core),
                in_specs=[
                    pl.BlockSpec((batch_p, numclasses), resident),   # b (bf16, resident)
                    pl.BlockSpec((batch_p, 1), resident),            # ||b_i||^2 (+sentinel)
                    pl.BlockSpec((batch_p, 1), resident),            # batch label masks
                    pl.BlockSpec((numclasses, tile_n), tile),        # B tile (int8)
                    pl.BlockSpec((1, tile_n), tile),                 # stored label masks
                ],
                out_specs=pl.BlockSpec((8, 128), lambda p, j: (p, 0)),
                scratch_shapes=[pltpu.VMEM((batch_p, tile_n), jnp.float32)],
            ),
            compiler_params=pltpu.CompilerParams(dimension_semantics=dim_sems),
        )(b_p, bsq_p, bmask_p, B_new, Tmask_new)

        # combine per-core partial sums
        kernel_sum = jnp.sum(out[0::8, 0])

        # Padded columns (>= num_train) hold zero codes with Tmask == 0, so each
        # contributes 0.5 * relu(16 - ||b_i||^2) per valid batch row; remove exactly.
        pad_cols = float(n_pad - num_train)
        pad_corr = pad_cols * jnp.sum(0.5 * jnp.maximum(_MARGIN - bsq, 0.0))

        loss1 = (kernel_sum - pad_corr) / float(batch * num_train)
        loss2 = 0.1 * reg_sum / float(num_train * numclasses)

        new_state = {"B": B_new, "Tmask": Tmask_new, "reg_sum": reg_sum}
        return loss1, loss2, new_state

    return init_state, forward


if __name__ == "__main__":
    num_train, bit, numclasses, batch = 3000, 8, 8, 6

    init_state, forward = make_dsh_loss(num_train, bit, numclasses)
    state = init_state()

    # pure-JAX reference with the module's original state layout (f32 B / one-hot T)
    B_ref_state = jnp.zeros((num_train, numclasses), jnp.float32)
    T_ref_state = jnp.zeros((num_train, bit), jnp.float32)

    key = jax.random.PRNGKey(0)
    for it in range(2):          # two steps to exercise the stateful scatter update
        key, k1, k2, k3 = jax.random.split(key, 4)
        output = jax.random.normal(k1, (batch, numclasses), dtype=jnp.float32)
        labels = jax.random.randint(k2, (batch,), 0, bit)
        lab = jnp.eye(bit, dtype=jnp.float32)[labels]
        batch_index = jax.random.permutation(k3, num_train)[:batch].astype(jnp.int32)

        loss1, loss2, state = forward(output, batch_index, lab, state)
        jax.block_until_ready((loss1, loss2))

        # reference (same semantics as the PyTorch forward)
        b = jnp.sign(output)
        B_ref_state = B_ref_state.at[batch_index].set(b)
        T_ref_state = T_ref_state.at[batch_index].set(lab)
        dist_ref = jnp.sum((b[:, None, :] - B_ref_state[None, :, :]) ** 2, axis=2)
        dissim_ref = (lab @ T_ref_state.T == 0).astype(jnp.float32)
        loss_ref = (0.5 * (1.0 - dissim_ref) * dist_ref
                    + 0.5 * dissim_ref * jnp.maximum(_MARGIN - dist_ref, 0.0))
        l1_ref = jnp.mean(loss_ref)
        l2_ref = 0.1 * jnp.mean(jnp.abs(B_ref_state - 1.0))

        tol1 = 1e-4 * max(1.0, abs(float(l1_ref)))
        assert abs(float(loss1) - float(l1_ref)) < tol1, (it, float(loss1), float(l1_ref))
        assert abs(float(loss2) - float(l2_ref)) < 1e-5, (it, float(loss2), float(l2_ref))

    print("KERNEL_OK")
</pallas_src>

<mosaic_0001>
module attributes {stable_mosaic.version = 11 : i64} {
  func.func @_dsh_loss_kernel(%arg0: i32, %arg1: i32, %arg2: memref<8x8xbf16, #tpu.memory_space<vmem>>, %arg3: memref<8x1xf32, #tpu.memory_space<vmem>>, %arg4: memref<8x1xi32, #tpu.memory_space<vmem>>, %arg5: memref<8x3072xi8, #tpu.memory_space<vmem>>, %arg6: memref<1x3072xi32, #tpu.memory_space<vmem>>, %arg7: memref<8x128xf32, #tpu.memory_space<vmem>>, %arg8: memref<8x3072xf32, #tpu.memory_space<vmem>>) attributes {dimension_semantics = [#tpu.dimension_semantics<parallel>, #tpu.dimension_semantics<arbitrary>], iteration_bounds = array<i64: 1, 1>, scalar_prefetch = 0 : i64, scratch_operands = 1 : i64, tpu.core_type = #tpu.core_type<tc>, window_params = [{pipeline_mode = #tpu.pipeline_mode<synchronous>, transform_indices = @transform_0, window_bounds = array<i64: 8, 8>}, {pipeline_mode = #tpu.pipeline_mode<synchronous>, transform_indices = @transform_1, window_bounds = array<i64: 8, 1>}, {pipeline_mode = #tpu.pipeline_mode<synchronous>, transform_indices = @transform_2, window_bounds = array<i64: 8, 1>}, {transform_indices = @transform_3, window_bounds = array<i64: 8, 3072>}, {transform_indices = @transform_4, window_bounds = array<i64: 1, 3072>}, {transform_indices = @transform_5, window_bounds = array<i64: 8, 128>}]} {
    %c0_i32 = arith.constant 0 : i32
    %0 = arith.cmpi eq, %arg1, %c0_i32 : i32
    %1 = arith.extui %0 : i1 to i32
    %c0_i32_0 = arith.constant 0 : i32
    %2 = arith.cmpi ne, %1, %c0_i32_0 : i32
    scf.if %2 {
      %cst_22 = arith.constant 0.000000e+00 : f32
      %38 = vector.broadcast %cst_22 : f32 to vector<8x3072xf32>
      %c0_23 = arith.constant 0 : index
      %c0_24 = arith.constant 0 : index
      %39 = vector.load %arg8[%c0_23, %c0_24] : memref<8x3072xf32, #tpu.memory_space<vmem>>, vector<8x3072xf32>
      tpu.vector_store %arg8[%c0_23, %c0_24], %38 {strides = array<i32>} : memref<8x3072xf32, #tpu.memory_space<vmem>>, vector<8x3072xf32>,
    } else {
    }
    %c0 = arith.constant 0 : index
    %c0_1 = arith.constant 0 : index
    %3 = vector.load %arg2[%c0, %c0_1] : memref<8x8xbf16, #tpu.memory_space<vmem>>, vector<8x8xbf16>
    %c0_2 = arith.constant 0 : index
    %c0_3 = arith.constant 0 : index
    %4 = vector.load %arg5[%c0_2, %c0_3] : memref<8x3072xi8, #tpu.memory_space<vmem>>, vector<8x3072xi8>
    %5 = arith.sitofp %4 : vector<8x3072xi8> to vector<8x3072xbf16>
    %6 = arith.sitofp %4 : vector<8x3072xi8> to vector<8x3072xf32>
    %cst = arith.constant dense<0.000000e+00> : vector<8x3072xf32>
    %7 = tpu.matmul %3, %5, %cst {dimension_numbers = #tpu.dot_dimension_numbers<[1], [0], [0], [1], [0, 0, 1, 1], [], []>} : vector<8x8xbf16>, vector<8x3072xbf16>, vector<8x3072xf32> -> vector<8x3072xf32>
    %8 = arith.mulf %6, %6 : vector<8x3072xf32>
    %cst_4 = arith.constant dense<0.000000e+00> : vector<3072xf32>
    %9 = vector.multi_reduction <add>, %8, %cst_4 [0] : vector<8x3072xf32> to vector<3072xf32>
    %10 = vector.shape_cast %9 : vector<3072xf32> to vector<1x3072xf32>
    %c0_5 = arith.constant 0 : index
    %c0_6 = arith.constant 0 : index
    %11 = vector.load %arg3[%c0_5, %c0_6] : memref<8x1xf32, #tpu.memory_space<vmem>>, vector<8x1xf32>
    %12 = vector.broadcast %11 : vector<8x1xf32> to vector<8x3072xf32>
    %13 = vector.broadcast %10 : vector<1x3072xf32> to vector<8x3072xf32>
    %14 = arith.addf %12, %13 : vector<8x3072xf32>
    %cst_7 = arith.constant 2.000000e+00 : f32
    %15 = vector.broadcast %cst_7 : f32 to vector<8x3072xf32>
    %16 = arith.mulf %15, %7 : vector<8x3072xf32>
    %17 = arith.subf %14, %16 : vector<8x3072xf32>
    %c0_8 = arith.constant 0 : index
    %c0_9 = arith.constant 0 : index
    %18 = vector.load %arg4[%c0_8, %c0_9] : memref<8x1xi32, #tpu.memory_space<vmem>>, vector<8x1xi32>
    %c0_10 = arith.constant 0 : index
    %c0_11 = arith.constant 0 : index
    %19 = vector.load %arg6[%c0_10, %c0_11] : memref<1x3072xi32, #tpu.memory_space<vmem>>, vector<1x3072xi32>
    %20 = vector.broadcast %18 : vector<8x1xi32> to vector<8x3072xi32>
    %21 = vector.broadcast %19 : vector<1x3072xi32> to vector<8x3072xi32>
    %22 = arith.andi %20, %21 : vector<8x3072xi32>
    %c0_i32_12 = arith.constant 0 : i32
    %23 = vector.broadcast %c0_i32_12 : i32 to vector<8x3072xi32>
    %24 = arith.cmpi eq, %22, %23 : vector<8x3072xi32>
    %cst_13 = arith.constant 1.600000e+01 : f32
    %25 = vector.broadcast %cst_13 : f32 to vector<8x3072xf32>
    %26 = arith.subf %25, %17 : vector<8x3072xf32>
    %cst_14 = arith.constant 0.000000e+00 : f32
    %27 = vector.broadcast %cst_14 : f32 to vector<8x3072xf32>
    %28 = arith.maximumf %26, %27 : vector<8x3072xf32>
    %29 = arith.select %24, %28, %17 : vector<8x3072xi1>, vector<8x3072xf32>
    %cst_15 = arith.constant 5.000000e-01 : f32
    %30 = vector.broadcast %cst_15 : f32 to vector<8x3072xf32>
    %31 = arith.mulf %30, %29 : vector<8x3072xf32>
    %c0_16 = arith.constant 0 : index
    %c0_17 = arith.constant 0 : index
    %32 = vector.load %arg8[%c0_16, %c0_17] : memref<8x3072xf32, #tpu.memory_space<vmem>>, vector<8x3072xf32>
    %33 = arith.addf %32, %31 : vector<8x3072xf32>
    %c0_18 = arith.constant 0 : index
    %c0_19 = arith.constant 0 : index
    %34 = vector.load %arg8[%c0_18, %c0_19] : memref<8x3072xf32, #tpu.memory_space<vmem>>, vector<8x3072xf32>
    tpu.vector_store %arg8[%c0_18, %c0_19], %33 {strides = array<i32>} : memref<8x3072xf32, #tpu.memory_space<vmem>>, vector<8x3072xf32>,
    %c0_i32_20 = arith.constant 0 : i32
    %35 = arith.cmpi eq, %arg1, %c0_i32_20 : i32
    %36 = arith.extui %35 : i1 to i32
    %c0_i32_21 = arith.constant 0 : i32
    %37 = arith.cmpi ne, %36, %c0_i32_21 : i32
    scf.if %37 {
      %c0_22 = arith.constant 0 : index
      %c0_23 = arith.constant 0 : index
      %38 = vector.load %arg8[%c0_22, %c0_23] : memref<8x3072xf32, #tpu.memory_space<vmem>>, vector<8x3072xf32>
      %39 = vector.shape_cast %38 : vector<8x3072xf32> to vector<1x8x3072xf32>
      %cst_24 = arith.constant dense<0.000000e+00> : vector<1xf32>
      %40 = vector.multi_reduction <add>, %39, %cst_24 [1, 2] : vector<1x8x3072xf32> to vector<1xf32>
      %41 = vector.shape_cast %40 : vector<1xf32> to vector<1x1x1xf32>
      %42 = vector.extract %41[0, 0, 0] : f32 from vector<1x1x1xf32>
      %cst_25 = arith.constant 1.000000e+00 : f32
      %43 = vector.broadcast %cst_25 : f32 to vector<8x128xf32>
      %44 = vector.broadcast %42 : f32 to vector<8x128xf32>
      %45 = arith.mulf %44, %43 : vector<8x128xf32>
      %c0_26 = arith.constant 0 : index
      %c0_27 = arith.constant 0 : index
      %46 = vector.load %arg7[%c0_26, %c0_27] : memref<8x128xf32, #tpu.memory_space<vmem>>, vector<8x128xf32>
      tpu.vector_store %arg7[%c0_26, %c0_27], %45 {strides = array<i32>} : memref<8x128xf32, #tpu.memory_space<vmem>>, vector<8x128xf32>,
    } else {
    }
    return
  }
  func.func @transform_0(%arg0: i32, %arg1: i32) -> (i32, i32) {
    %c0_i32 = arith.constant 0 : i32
    %c0_i32_0 = arith.constant 0 : i32
    %c0_i32_1 = arith.constant 0 : i32
    return %c0_i32, %c0_i32_0 : i32, i32
  }
  func.func @transform_1(%arg0: i32, %arg1: i32) -> (i32, i32) {
    %c0_i32 = arith.constant 0 : i32
    %c0_i32_0 = arith.constant 0 : i32
    %c0_i32_1 = arith.constant 0 : i32
    return %c0_i32, %c0_i32_0 : i32, i32
  }
  func.func @transform_2(%arg0: i32, %arg1: i32) -> (i32, i32) {
    %c0_i32 = arith.constant 0 : i32
    %c0_i32_0 = arith.constant 0 : i32
    %c0_i32_1 = arith.constant 0 : i32
    return %c0_i32, %c0_i32_0 : i32, i32
  }
  func.func @transform_3(%arg0: i32, %arg1: i32) -> (i32, i32) {
    %c1_i32 = arith.constant 1 : i32
    %0 = arith.muli %arg0, %c1_i32 : i32
    %1 = arith.addi %0, %arg1 : i32
    %c0_i32 = arith.constant 0 : i32
    %c0_i32_0 = arith.constant 0 : i32
    return %c0_i32, %1 : i32, i32
  }
  func.func @transform_4(%arg0: i32, %arg1: i32) -> (i32, i32) {
    %c1_i32 = arith.constant 1 : i32
    %0 = arith.muli %arg0, %c1_i32 : i32
    %1 = arith.addi %0, %arg1 : i32
    %c0_i32 = arith.constant 0 : i32
    %c0_i32_0 = arith.constant 0 : i32
    return %c0_i32, %1 : i32, i32
  }
  func.func @transform_5(%arg0: i32, %arg1: i32) -> (i32, i32) {
    %c0_i32 = arith.constant 0 : i32
    %c0_i32_0 = arith.constant 0 : i32
    return %arg0, %c0_i32 : i32, i32
  }
}

</mosaic_0001>

<llo_original>
// kernel: forward.1
$region0: #{forward.1}
  #allocation0 [shape = 'u32[]', space=smem, size = 0x4, offset = 0x4, fixed_abs, tag = 'smem constant byte address 0x4 - core index']
  #allocation1 [shape = 'u32[144,128]{1,0:T(1,128)}', space=vmem, size = 0x12000, scoped, tag = 'internal scratch']
  #allocation2 [shape = 'f32[8,3072]{1,0:T(8,128)}', space=vmem, size = 0x18000, scoped, tag = 'scratch operand']
  %s0 = inlined_call_operand.vmem [shape: bf16[8,8], index: 0, kind: input, shape index: {}]
  %s1 = inlined_call_operand.vmem [shape: f32[8,1], index: 1, kind: input, shape index: {}]
  %s2 = inlined_call_operand.vmem [shape: s32[8,1], index: 2, kind: input, shape index: {}]
  %s3 = inlined_call_operand.vmem [shape: s8[8,3072], index: 3, kind: input, shape index: {}]
  %s4 = inlined_call_operand.vmem [shape: s32[1,3072], index: 4, kind: input, shape index: {}]
  %s5 = inlined_call_operand.vmem [shape: f32[8,128], index: 5, kind: output, shape index: {}]
  %s6 = sld [smem:[#allocation0]]
  $region38: #{forward.1} parent=0
    _
  %s8 = ssub.s32 1, %s6
  %s9 = scalar_select 0, %s8, %s6
  // Predicated region
  $region2: #{forward.1} parent=0 // pred_check
    _
  $region3: #{forward.1} parent=0 // pred_check_branch
    %11 = sbr.rel (0) target = $region5
  $region4: #{forward.1} parent=0 // pred_region
    _
  $region5: #{forward.1} parent=0 // pred_fallthru
    _
  // Predicated region
  $region6: #{forward.1} parent=0 // pred_check
    _
  $region7: #{forward.1} parent=0 // pred_check_branch
    %13 = sbr.rel (0) target = $region9
  $region8: #{forward.1} parent=0 // pred_region
    _
  $region9: #{forward.1} parent=0 // pred_fallthru
    _
  // Predicated region
  $region10: #{forward.1} parent=0 // pred_check
    _
  $region11: #{forward.1} parent=0 // pred_check_branch
    %15 = sbr.rel (0) target = $region13
  $region12: #{forward.1} parent=0 // pred_region
    _
  $region13: #{forward.1} parent=0 // pred_fallthru
    _
  // Predicated region
  $region14: #{forward.1} parent=0 // pred_check
    _
  $region15: #{forward.1} parent=0 // pred_check_branch
    %17 = sbr.rel (0) target = $region17
  $region16: #{forward.1} parent=0 // pred_region
    %s18 = sadd.s32 0, 0
    %s19 = smul.u32 24, %s18
    %p20 = scmp.lt.s32.totalorder %s19, 23
    %s21 = scalar_select %p20, %s19, 23
    %s22 = smul.addr %s21, 2
    %s23 = scalar_lea.vmem %s3, %s22
    %s24 = sadd.s32 0, 0
    %s25 = smul.u32 24, %s24
  $region17: #{forward.1} parent=0 // pred_fallthru
    _
  // Predicated region
  $region18: #{forward.1} parent=0 // pred_check
    _
  $region19: #{forward.1} parent=0 // pred_check_branch
    %27 = sbr.rel (0) target = $region21
  $region20: #{forward.1} parent=0 // pred_region
    %s28 = sadd.s32 0, 0
    %s29 = smul.u32 24, %s28
    %p30 = scmp.lt.s32.totalorder %s29, 23
    %s31 = scalar_select %p30, %s29, 23
    %s32 = scalar_lea.vmem %s4, %s31
    %s33 = sadd.s32 0, 0
    %s34 = smul.u32 24, %s33
  $region21: #{forward.1} parent=0 // pred_fallthru
    _
  %s35 = sadd.s32 0, 0
  %s36 = smul.u32 24, %s35
  %p37 = scmp.lt.s32.totalorder %s36, 23
  %s38 = scalar_select %p37, %s36, 23
  %s39 = smul.addr %s38, 2
  %s40 = scalar_lea.vmem %s3, %s39
  %s41 = sadd.s32 0, 0
  %s42 = smul.u32 24, %s41
  %p43 = scmp.lt.s32.totalorder %s42, 23
  %s44 = scalar_select %p43, %s42, 23
  %s45 = scalar_lea.vmem %s4, %s44
  %s46 = sadd.s32 0, 0
  %s47 = smul.u32 24, %s46
  %p48 = scmp.lt.s32.totalorder %s47, 23
  %s49 = scalar_select %p48, %s47, 23
  %s50 = smul.addr %s49, 2
  %s51 = scalar_lea.vmem %s3, %s50
  %s52 = sadd.s32 0, 0
  %s53 = smul.u32 24, %s52
  %s54 = sadd.s32 0, 0
  %s55 = smul.u32 24, %s54
  %p56 = scmp.lt.s32.totalorder %s55, 23
  %s57 = scalar_select %p56, %s55, 23
  %s58 = scalar_lea.vmem %s4, %s57
  %s59 = sadd.s32 0, 0
  %s60 = smul.u32 24, %s59
  %p62 = scmp.eq.s32.totalorder 0, 0
  // Predicated region
  $region22: #{forward.1} parent=0 // pred_check
    %p63 = pneg %p62
  $region23: #{forward.1} parent=0 // pred_check_branch
    %65 = sbr.rel (%p63) target = $region25
  $region24: #{forward.1} parent=0 // pred_region
    %66 = vst [vmem:[#allocation2] sm:$0xff] 0.0
    %67 = vst [vmem:[#allocation2 + $0x8] sm:$0xff] 0.0
    %68 = vst [vmem:[#allocation2 + $0x10] sm:$0xff] 0.0
    %69 = vst [vmem:[#allocation2 + $0x18] sm:$0xff] 0.0
    %70 = vst [vmem:[#allocation2 + $0x20] sm:$0xff] 0.0
    %71 = vst [vmem:[#allocation2 + $0x28] sm:$0xff] 0.0
    %72 = vst [vmem:[#allocation2 + $0x30] sm:$0xff] 0.0
    %73 = vst [vmem:[#allocation2 + $0x38] sm:$0xff] 0.0
    %74 = vst [vmem:[#allocation2 + $0x40] sm:$0xff] 0.0
    %75 = vst [vmem:[#allocation2 + $0x48] sm:$0xff] 0.0
    %76 = vst [vmem:[#allocation2 + $0x50] sm:$0xff] 0.0
    %77 = vst [vmem:[#allocation2 + $0x58] sm:$0xff] 0.0
    %78 = vst [vmem:[#allocation2 + $0x60] sm:$0xff] 0.0
    %79 = vst [vmem:[#allocation2 + $0x68] sm:$0xff] 0.0
    %80 = vst [vmem:[#allocation2 + $0x70] sm:$0xff] 0.0
    %81 = vst [vmem:[#allocation2 + $0x78] sm:$0xff] 0.0
    %82 = vst [vmem:[#allocation2 + $0x80] sm:$0xff] 0.0
    %83 = vst [vmem:[#allocation2 + $0x88] sm:$0xff] 0.0
    %84 = vst [vmem:[#allocation2 + $0x90] sm:$0xff] 0.0
    %85 = vst [vmem:[#allocation2 + $0x98] sm:$0xff] 0.0
    %86 = vst [vmem:[#allocation2 + $0xa0] sm:$0xff] 0.0
    %87 = vst [vmem:[#allocation2 + $0xa8] sm:$0xff] 0.0
    %88 = vst [vmem:[#allocation2 + $0xb0] sm:$0xff] 0.0
    %89 = vst [vmem:[#allocation2 + $0xb8] sm:$0xff] 0.0
  $region25: #{forward.1} parent=0 // pred_fallthru
    _
  %v90 = vld [vmem:[%s0] sm:$0xf]
  %v91 = vld [vmem:[%s51] sm:$0xff]
  %v92 = vld [vmem:[%s51 + $0x8] sm:$0xff]
  %v93 = vld [vmem:[%s51 + $0x10] sm:$0xff]
  %v94 = vld [vmem:[%s51 + $0x18] sm:$0xff]
  %v95 = vld [vmem:[%s51 + $0x20] sm:$0xff]
  %v96 = vld [vmem:[%s51 + $0x28] sm:$0xff]
  %v97 = vunpack.c.l.s8.bf16 %v91
  %v98 = vunpack.c.h.s8.bf16 %v91
  %v99 = vunpack.c.l.s8.bf16 %v92
  %v100 = vunpack.c.h.s8.bf16 %v92
  %v101 = vunpack.c.l.s8.bf16 %v93
  %v102 = vunpack.c.h.s8.bf16 %v93
  %v103 = vunpack.c.l.s8.bf16 %v94
  %v104 = vunpack.c.h.s8.bf16 %v94
  %v105 = vunpack.c.l.s8.bf16 %v95
  %v106 = vunpack.c.h.s8.bf16 %v95
  %v107 = vunpack.c.l.s8.bf16 %v96
  %v108 = vunpack.c.h.s8.bf16 %v96
  %v109 = vunpack.c.0.s8 %v91
  %v110 = vunpack.c.1.s8 %v91
  %v111 = vunpack.c.2.s8 %v91
  %v112 = vunpack.c.3.s8 %v91
  %v113 = vunpack.c.0.s8 %v92
  %v114 = vunpack.c.1.s8 %v92
  %v115 = vunpack.c.2.s8 %v92
  %v116 = vunpack.c.3.s8 %v92
  %v117 = vunpack.c.0.s8 %v93
  %v118 = vunpack.c.1.s8 %v93
  %v119 = vunpack.c.2.s8 %v93
  %v120 = vunpack.c.3.s8 %v93
  %v121 = vunpack.c.0.s8 %v94
  %v122 = vunpack.c.1.s8 %v94
  %v123 = vunpack.c.2.s8 %v94
  %v124 = vunpack.c.3.s8 %v94
  %v125 = vunpack.c.0.s8 %v95
  %v126 = vunpack.c.1.s8 %v95
  %v127 = vunpack.c.2.s8 %v95
  %v128 = vunpack.c.3.s8 %v95
  %v129 = vunpack.c.0.s8 %v96
  %v130 = vunpack.c.1.s8 %v96
  %v131 = vunpack.c.2.s8 %v96
  %v132 = vunpack.c.3.s8 %v96
  %v133 = vcvt.s32.f32 %v109
  %v134 = vcvt.s32.f32 %v110
  %v135 = vcvt.s32.f32 %v111
  %v136 = vcvt.s32.f32 %v112
  %v137 = vcvt.s32.f32 %v113
  %v138 = vcvt.s32.f32 %v114
  %v139 = vcvt.s32.f32 %v115
  %v140 = vcvt.s32.f32 %v116
  %v141 = vcvt.s32.f32 %v117
  %v142 = vcvt.s32.f32 %v118
  %v143 = vcvt.s32.f32 %v119
  %v144 = vcvt.s32.f32 %v120
  %v145 = vcvt.s32.f32 %v121
  %v146 = vcvt.s32.f32 %v122
  %v147 = vcvt.s32.f32 %v123
  %v148 = vcvt.s32.f32 %v124
  %v149 = vcvt.s32.f32 %v125
  %v150 = vcvt.s32.f32 %v126
  %v151 = vcvt.s32.f32 %v127
  %v152 = vcvt.s32.f32 %v128
  %v153 = vcvt.s32.f32 %v129
  %v154 = vcvt.s32.f32 %v130
  %v155 = vcvt.s32.f32 %v131
  %v156 = vcvt.s32.f32 %v132
  %v169 = vunpack.c.l.b16 %v97
  %v170 = vunpack.c.h.b16 %v97
  %v171 = vunpack.c.l.b16 %v98
  %v172 = vunpack.c.h.b16 %v98
  %v173 = vunpack.c.l.b16 %v99
  %v174 = vunpack.c.h.b16 %v99
  %v175 = vunpack.c.l.b16 %v100
  %v176 = vunpack.c.h.b16 %v100
  %v177 = vunpack.c.l.b16 %v101
  %v178 = vunpack.c.h.b16 %v101
  %v179 = vunpack.c.l.b16 %v102
  %v180 = vunpack.c.h.b16 %v102
  %v181 = vunpack.c.l.b16 %v103
  %v182 = vunpack.c.h.b16 %v103
  %v183 = vunpack.c.l.b16 %v104
  %v184 = vunpack.c.h.b16 %v104
  %v185 = vunpack.c.l.b16 %v105
  %v186 = vunpack.c.h.b16 %v105
  %v187 = vunpack.c.l.b16 %v106
  %v188 = vunpack.c.h.b16 %v106
  %v189 = vunpack.c.l.b16 %v107
  %v190 = vunpack.c.h.b16 %v107
  %v191 = vunpack.c.l.b16 %v108
  %v192 = vunpack.c.h.b16 %v108
  %v193 = vpack.c.b16 %v169, %v169
  %v194 = vpack.c.b16 %v170, %v170
  %v195 = vpack.c.b16 %v171, %v171
  %v196 = vpack.c.b16 %v172, %v172
  %v197 = vpack.c.b16 %v173, %v173
  %v198 = vpack.c.b16 %v174, %v174
  %v199 = vpack.c.b16 %v175, %v175
  %v200 = vpack.c.b16 %v176, %v176
  %v201 = vpack.c.b16 %v177, %v177
  %v202 = vpack.c.b16 %v178, %v178
  %v203 = vpack.c.b16 %v179, %v179
  %v204 = vpack.c.b16 %v180, %v180
  %v205 = vpack.c.b16 %v181, %v181
  %v206 = vpack.c.b16 %v182, %v182
  %v207 = vpack.c.b16 %v183, %v183
  %v208 = vpack.c.b16 %v184, %v184
  %v209 = vpack.c.b16 %v185, %v185
  %v210 = vpack.c.b16 %v186, %v186
  %v211 = vpack.c.b16 %v187, %v187
  %v212 = vpack.c.b16 %v188, %v188
  %v213 = vpack.c.b16 %v189, %v189
  %v214 = vpack.c.b16 %v190, %v190
  %v215 = vpack.c.b16 %v191, %v191
  %v216 = vpack.c.b16 %v192, %v192
  %vm217 = vcmask 64512
  %v219 = vsel %vm217, %v90, 0
  %vm221 = vcmask 1043456
  %v223 = vsel %vm221, %v193, 0
  %v226 = vsel %vm221, %v194, 0
  %v229 = vsel %vm221, %v195, 0
  %v232 = vsel %vm221, %v196, 0
  %v235 = vsel %vm221, %v197, 0
  %v238 = vsel %vm221, %v198, 0
  %v241 = vsel %vm221, %v199, 0
  %v244 = vsel %vm221, %v200, 0
  %v247 = vsel %vm221, %v201, 0
  %v250 = vsel %vm221, %v202, 0
  %v253 = vsel %vm221, %v203, 0
  %v256 = vsel %vm221, %v204, 0
  %v259 = vsel %vm221, %v205, 0
  %v262 = vsel %vm221, %v206, 0
  %v265 = vsel %vm221, %v207, 0
  %v268 = vsel %vm221, %v208, 0
  %v271 = vsel %vm221, %v209, 0
  %v274 = vsel %vm221, %v210, 0
  %v277 = vsel %vm221, %v211, 0
  %v280 = vsel %vm221, %v212, 0
  %v283 = vsel %vm221, %v213, 0
  %v286 = vsel %vm221, %v214, 0
  %v289 = vsel %vm221, %v215, 0
  %v292 = vsel %vm221, %v216, 0
  %294 = vmatprep.subr.bf16.mxu0 %v226
  %295 = vmatpush1.bf16.msra.mxu0 %v223
  %296 = vmatprep.subr.bf16.mxu0 0
  %297 = vmatpush1.bf16.msra.mxu0 0
  %298 = vmatprep.subr.bf16.mxu0 0
  %299 = vmatpush1.bf16.msra.mxu0 0
  %300 = vmatprep.subr.bf16.mxu0 0
  %301 = vmatpush1.bf16.msra.mxu0 0
  %302 = vmatprep.subr.bf16.mxu0 0
  %303 = vmatpush1.bf16.msra.mxu0 0
  %304 = vmatprep.subr.bf16.mxu0 0
  %305 = vmatpush1.bf16.msra.mxu0 0
  %306 = vmatprep.subr.bf16.mxu0 0
  %307 = vmatpush1.bf16.msra.mxu0 0
  %308 = vmatprep.subr.bf16.mxu0 0
  %309 = vmatpush1.bf16.msra.mxu0 0
  %310 = vmatprep.subr.bf16.mxu0 0
  %311 = vmatpush1.bf16.msra.mxu0 0
  %312 = vmatprep.subr.bf16.mxu0 0
  %313 = vmatpush1.bf16.msra.mxu0 0
  %314 = vmatprep.subr.bf16.mxu0 0
  %315 = vmatpush1.bf16.msra.mxu0 0
  %316 = vmatprep.subr.bf16.mxu0 0
  %317 = vmatpush1.bf16.msra.mxu0 0
  %318 = vmatprep.subr.bf16.mxu0 0
  %319 = vmatpush1.bf16.msra.mxu0 0
  %320 = vmatprep.subr.bf16.mxu0 0
  %321 = vmatpush1.bf16.msra.mxu0 0
  %322 = vmatprep.subr.bf16.mxu0 0
  %323 = vmatpush1.bf16.msra.mxu0 0
  %324 = vmatprep.subr.bf16.mxu0 0
  %325 = vmatpush1.bf16.msra.mxu0 0
  %326 = vmatprep.mubr.bf16.mxu0 0
  %327 = vmatmul.mubr.bf16.gmra.mrb[0].mxu0 %v219
  %v328 = vpop.f32.mrb[0].mxu0
  %v329 = vadd.f32 0.0, %v328
  %v330 = vpop.f32.mrb[0].mxu0
  %v331 = vadd.f32 0.0, %v330
  %v332 = vpop.f32.mrb[0].mxu0
  %v333 = vpop.f32.mrb[0].mxu0
  %334 = vdwg.mxu0
  %335 = vmatprep.subr.bf16.mxu0 %v232
  %336 = vmatpush1.bf16.msra.mxu0 %v229
  %337 = vmatprep.subr.bf16.mxu0 0
  %338 = vmatpush1.bf16.msra.mxu0 0
  %339 = vmatprep.subr.bf16.mxu0 0
  %340 = vmatpush1.bf16.msra.mxu0 0
  %341 = vmatprep.subr.bf16.mxu0 0
  %342 = vmatpush1.bf16.msra.mxu0 0
  %343 = vmatprep.subr.bf16.mxu0 0
  %344 = vmatpush1.bf16.msra.mxu0 0
  %345 = vmatprep.subr.bf16.mxu0 0
  %346 = vmatpush1.bf16.msra.mxu0 0
  %347 = vmatprep.subr.bf16.mxu0 0
  %348 = vmatpush1.bf16.msra.mxu0 0
  %349 = vmatprep.subr.bf16.mxu0 0
  %350 = vmatpush1.bf16.msra.mxu0 0
  %351 = vmatprep.subr.bf16.mxu0 0
  %352 = vmatpush1.bf16.msra.mxu0 0
  %353 = vmatprep.subr.bf16.mxu0 0
  %354 = vmatpush1.bf16.msra.mxu0 0
  %355 = vmatprep.subr.bf16.mxu0 0
  %356 = vmatpush1.bf16.msra.mxu0 0
  %357 = vmatprep.subr.bf16.mxu0 0
  %358 = vmatpush1.bf16.msra.mxu0 0
  %359 = vmatprep.subr.bf16.mxu0 0
  %360 = vmatpush1.bf16.msra.mxu0 0
  %361 = vmatprep.subr.bf16.mxu0 0
  %362 = vmatpush1.bf16.msra.mxu0 0
  %363 = vmatprep.subr.bf16.mxu0 0
  %364 = vmatpush1.bf16.msra.mxu0 0
  %365 = vmatprep.subr.bf16.mxu0 0
  %366 = vmatpush1.bf16.msra.mxu0 0
  %367 = vmatprep.mubr.bf16.mxu0 0
  %368 = vmatmul.mubr.bf16.gmra.mrb[0].mxu0 %v219
  %v369 = vpop.f32.mrb[0].mxu0
  %v370 = vadd.f32 0.0, %v369
  %v371 = vpop.f32.mrb[0].mxu0
  %v372 = vadd.f32 0.0, %v371
  %v373 = vpop.f32.mrb[0].mxu0
  %v374 = vpop.f32.mrb[0].mxu0
  %375 = vdwg.mxu0
  %376 = vmatprep.subr.bf16.mxu0 %v238
  %377 = vmatpush1.bf16.msra.mxu0 %v235
  %378 = vmatprep.subr.bf16.mxu0 0
  %379 = vmatpush1.bf16.msra.mxu0 0
  %380 = vmatprep.subr.bf16.mxu0 0
  %381 = vmatpush1.bf16.msra.mxu0 0
  %382 = vmatprep.subr.bf16.mxu0 0
  %383 = vmatpush1.bf16.msra.mxu0 0
  %384 = vmatprep.subr.bf16.mxu0 0
  %385 = vmatpush1.bf16.msra.mxu0 0
  %386 = vmatprep.subr.bf16.mxu0 0
  %387 = vmatpush1.bf16.msra.mxu0 0
  %388 = vmatprep.subr.bf16.mxu0 0
  %389 = vmatpush1.bf16.msra.mxu0 0
  %390 = vmatprep.subr.bf16.mxu0 0
  %391 = vmatpush1.bf16.msra.mxu0 0
  %392 = vmatprep.subr.bf16.mxu0 0
  %393 = vmatpush1.bf16.msra.mxu0 0
  %394 = vmatprep.subr.bf16.mxu0 0
  %395 = vmatpush1.bf16.msra.mxu0 0
  %396 = vmatprep.subr.bf16.mxu0 0
  %397 = vmatpush1.bf16.msra.mxu0 0
  %398 = vmatprep.subr.bf16.mxu0 0
  %399 = vmatpush1.bf16.msra.mxu0 0
  %400 = vmatprep.subr.bf16.mxu0 0
  %401 = vmatpush1.bf16.msra.mxu0 0
  %402 = vmatprep.subr.bf16.mxu0 0
  %403 = vmatpush1.bf16.msra.mxu0 0
  %404 = vmatprep.subr.bf16.mxu0 0
  %405 = vmatpush1.bf16.msra.mxu0 0
  %406 = vmatprep.subr.bf16.mxu0 0
  %407 = vmatpush1.bf16.msra.mxu0 0
  %408 = vmatprep.mubr.bf16.mxu0 0
  %409 = vmatmul.mubr.bf16.gmra.mrb[0].mxu0 %v219
  %v410 = vpop.f32.mrb[0].mxu0
  %v411 = vadd.f32 0.0, %v410
  %v412 = vpop.f32.mrb[0].mxu0
  %v413 = vadd.f32 0.0, %v412
  %v414 = vpop.f32.mrb[0].mxu0
  %v415 = vpop.f32.mrb[0].mxu0
  %416 = vdwg.mxu0
  %417 = vmatprep.subr.bf16.mxu0 %v244
  %418 = vmatpush1.bf16.msra.mxu0 %v241
  %419 = vmatprep.subr.bf16.mxu0 0
  %420 = vmatpush1.bf16.msra.mxu0 0
  %421 = vmatprep.subr.bf16.mxu0 0
  %422 = vmatpush1.bf16.msra.mxu0 0
  %423 = vmatprep.subr.bf16.mxu0 0
  %424 = vmatpush1.bf16.msra.mxu0 0
  %425 = vmatprep.subr.bf16.mxu0 0
  %426 = vmatpush1.bf16.msra.mxu0 0
  %427 = vmatprep.subr.bf16.mxu0 0
  %428 = vmatpush1.bf16.msra.mxu0 0
  %429 = vmatprep.subr.bf16.mxu0 0
  %430 = vmatpush1.bf16.msra.mxu0 0
  %431 = vmatprep.subr.bf16.mxu0 0
  %432 = vmatpush1.bf16.msra.mxu0 0
  %433 = vmatprep.subr.bf16.mxu0 0
  %434 = vmatpush1.bf16.msra.mxu0 0
  %435 = vmatprep.subr.bf16.mxu0 0
  %436 = vmatpush1.bf16.msra.mxu0 0
  %437 = vmatprep.subr.bf16.mxu0 0
  %438 = vmatpush1.bf16.msra.mxu0 0
  %439 = vmatprep.subr.bf16.mxu0 0
  %440 = vmatpush1.bf16.msra.mxu0 0
  %441 = vmatprep.subr.bf16.mxu0 0
  %442 = vmatpush1.bf16.msra.mxu0 0
  %443 = vmatprep.subr.bf16.mxu0 0
  %444 = vmatpush1.bf16.msra.mxu0 0
  %445 = vmatprep.subr.bf16.mxu0 0
  %446 = vmatpush1.bf16.msra.mxu0 0
  %447 = vmatprep.subr.bf16.mxu0 0
  %448 = vmatpush1.bf16.msra.mxu0 0
  %449 = vmatprep.mubr.bf16.mxu0 0
  %450 = vmatmul.mubr.bf16.gmra.mrb[0].mxu0 %v219
  %v451 = vpop.f32.mrb[0].mxu0
  %v452 = vadd.f32 0.0, %v451
  %v453 = vpop.f32.mrb[0].mxu0
  %v454 = vadd.f32 0.0, %v453
  %v455 = vpop.f32.mrb[0].mxu0
  %v456 = vpop.f32.mrb[0].mxu0
  %457 = vdwg.mxu0
  %458 = vmatprep.subr.bf16.mxu0 %v250
  %459 = vmatpush1.bf16.msra.mxu0 %v247
  %460 = vmatprep.subr.bf16.mxu0 0
  %461 = vmatpush1.bf16.msra.mxu0 0
  %462 = vmatprep.subr.bf16.mxu0 0
  %463 = vmatpush1.bf16.msra.mxu0 0
  %464 = vmatprep.subr.bf16.mxu0 0
  %465 = vmatpush1.bf16.msra.mxu0 0
  %466 = vmatprep.subr.bf16.mxu0 0
  %467 = vmatpush1.bf16.msra.mxu0 0
  %468 = vmatprep.subr.bf16.mxu0 0
  %469 = vmatpush1.bf16.msra.mxu0 0
  %470 = vmatprep.subr.bf16.mxu0 0
  %471 = vmatpush1.bf16.msra.mxu0 0
  %472 = vmatprep.subr.bf16.mxu0 0
  %473 = vmatpush1.bf16.msra.mxu0 0
  %474 = vmatprep.subr.bf16.mxu0 0
  %475 = vmatpush1.bf16.msra.mxu0 0
  %476 = vmatprep.subr.bf16.mxu0 0
  %477 = vmatpush1.bf16.msra.mxu0 0
  %478 = vmatprep.subr.bf16.mxu0 0
  %479 = vmatpush1.bf16.msra.mxu0 0
  %480 = vmatprep.subr.bf16.mxu0 0
  %481 = vmatpush1.bf16.msra.mxu0 0
  %482 = vmatprep.subr.bf16.mxu0 0
  %483 = vmatpush1.bf16.msra.mxu0 0
  %484 = vmatprep.subr.bf16.mxu0 0
  %485 = vmatpush1.bf16.msra.mxu0 0
  %486 = vmatprep.subr.bf16.mxu0 0
  %487 = vmatpush1.bf16.msra.mxu0 0
  %488 = vmatprep.subr.bf16.mxu0 0
  %489 = vmatpush1.bf16.msra.mxu0 0
  %490 = vmatprep.mubr.bf16.mxu0 0
  %491 = vmatmul.mubr.bf16.gmra.mrb[0].mxu0 %v219
  %v492 = vpop.f32.mrb[0].mxu0
  %v493 = vadd.f32 0.0, %v492
  %v494 = vpop.f32.mrb[0].mxu0
  %v495 = vadd.f32 0.0, %v494
  %v496 = vpop.f32.mrb[0].mxu0
  %v497 = vpop.f32.mrb[0].mxu0
  %498 = vdwg.mxu0
  %499 = vmatprep.subr.bf16.mxu0 %v256
  %500 = vmatpush1.bf16.msra.mxu0 %v253
  %501 = vmatprep.subr.bf16.mxu0 0
  %502 = vmatpush1.bf16.msra.mxu0 0
  %503 = vmatprep.subr.bf16.mxu0 0
  %504 = vmatpush1.bf16.msra.mxu0 0
  %505 = vmatprep.subr.bf16.mxu0 0
  %506 = vmatpush1.bf16.msra.mxu0 0
  %507 = vmatprep.subr.bf16.mxu0 0
  %508 = vmatpush1.bf16.msra.mxu0 0
  %509 = vmatprep.subr.bf16.mxu0 0
  %510 = vmatpush1.bf16.msra.mxu0 0
  %511 = vmatprep.subr.bf16.mxu0 0
  %512 = vmatpush1.bf16.msra.mxu0 0
  %513 = vmatprep.subr.bf16.mxu0 0
  %514 = vmatpush1.bf16.msra.mxu0 0
  %515 = vmatprep.subr.bf16.mxu0 0
  %516 = vmatpush1.bf16.msra.mxu0 0
  %517 = vmatprep.subr.bf16.mxu0 0
  %518 = vmatpush1.bf16.msra.mxu0 0
  %519 = vmatprep.subr.bf16.mxu0 0
  %520 = vmatpush1.bf16.msra.mxu0 0
  %521 = vmatprep.subr.bf16.mxu0 0
  %522 = vmatpush1.bf16.msra.mxu0 0
  %523 = vmatprep.subr.bf16.mxu0 0
  %524 = vmatpush1.bf16.msra.mxu0 0
  %525 = vmatprep.subr.bf16.mxu0 0
  %526 = vmatpush1.bf16.msra.mxu0 0
  %527 = vmatprep.subr.bf16.mxu0 0
  %528 = vmatpush1.bf16.msra.mxu0 0
  %529 = vmatprep.subr.bf16.mxu0 0
  %530 = vmatpush1.bf16.msra.mxu0 0
  %531 = vmatprep.mubr.bf16.mxu0 0
  %532 = vmatmul.mubr.bf16.gmra.mrb[0].mxu0 %v219
  %v533 = vpop.f32.mrb[0].mxu0
  %v534 = vadd.f32 0.0, %v533
  %v535 = vpop.f32.mrb[0].mxu0
  %v536 = vadd.f32 0.0, %v535
  %v537 = vpop.f32.mrb[0].mxu0
  %v538 = vpop.f32.mrb[0].mxu0
  %539 = vdwg.mxu0
  %540 = vmatprep.subr.bf16.mxu0 %v262
  %541 = vmatpush1.bf16.msra.mxu0 %v259
  %542 = vmatprep.subr.bf16.mxu0 0
  %543 = vmatpush1.bf16.msra.mxu0 0
  %544 = vmatprep.subr.bf16.mxu0 0
  %545 = vmatpush1.bf16.msra.mxu0 0
  %546 = vmatprep.subr.bf16.mxu0 0
  %547 = vmatpush1.bf16.msra.mxu0 0
  %548 = vmatprep.subr.bf16.mxu0 0
  %549 = vmatpush1.bf16.msra.mxu0 0
  %550 = vmatprep.subr.bf16.mxu0 0
  %551 = vmatpush1.bf16.msra.mxu0 0
  %552 = vmatprep.subr.bf16.mxu0 0
  %553 = vmatpush1.bf16.msra.mxu0 0
  %554 = vmatprep.subr.bf16.mxu0 0
  %555 = vmatpush1.bf16.msra.mxu0 0
  %556 = vmatprep.subr.bf16.mxu0 0
  %557 = vmatpush1.bf16.msra.mxu0 0
  %558 = vmatprep.subr.bf16.mxu0 0
  %559 = vmatpush1.bf16.msra.mxu0 0
  %560 = vmatprep.subr.bf16.mxu0 0
  %561 = vmatpush1.bf16.msra.mxu0 0
  %562 = vmatprep.subr.bf16.mxu0 0
  %563 = vmatpush1.bf16.msra.mxu0 0
  %564 = vmatprep.subr.bf16.mxu0 0
  %565 = vmatpush1.bf16.msra.mxu0 0
  %566 = vmatprep.subr.bf16.mxu0 0
  %567 = vmatpush1.bf16.msra.mxu0 0
  %568 = vmatprep.subr.bf16.mxu0 0
  %569 = vmatpush1.bf16.msra.mxu0 0
  %570 = vmatprep.subr.bf16.mxu0 0
  %571 = vmatpush1.bf16.msra.mxu0 0
  %572 = vmatprep.mubr.bf16.mxu0 0
  %573 = vmatmul.mubr.bf16.gmra.mrb[0].mxu0 %v219
  %v574 = vpop.f32.mrb[0].mxu0
  %v575 = vadd.f32 0.0, %v574
  %v576 = vpop.f32.mrb[0].mxu0
  %v577 = vadd.f32 0.0, %v576
  %v578 = vpop.f32.mrb[0].mxu0
  %v579 = vpop.f32.mrb[0].mxu0
  %580 = vdwg.mxu0
  %581 = vmatprep.subr.bf16.mxu0 %v268
  %582 = vmatpush1.bf16.msra.mxu0 %v265
  %583 = vmatprep.subr.bf16.mxu0 0
  %584 = vmatpush1.bf16.msra.mxu0 0
  %585 = vmatprep.subr.bf16.mxu0 0
  %586 = vmatpush1.bf16.msra.mxu0 0
  %587 = vmatprep.subr.bf16.mxu0 0
  %588 = vmatpush1.bf16.msra.mxu0 0
  %589 = vmatprep.subr.bf16.mxu0 0
  %590 = vmatpush1.bf16.msra.mxu0 0
  %591 = vmatprep.subr.bf16.mxu0 0
  %592 = vmatpush1.bf16.msra.mxu0 0
  %593 = vmatprep.subr.bf16.mxu0 0
  %594 = vmatpush1.bf16.msra.mxu0 0
  %595 = vmatprep.subr.bf16.mxu0 0
  %596 = vmatpush1.bf16.msra.mxu0 0
  %597 = vmatprep.subr.bf16.mxu0 0
  %598 = vmatpush1.bf16.msra.mxu0 0
  %599 = vmatprep.subr.bf16.mxu0 0
  %600 = vmatpush1.bf16.msra.mxu0 0
  %601 = vmatprep.subr.bf16.mxu0 0
  %602 = vmatpush1.bf16.msra.mxu0 0
  %603 = vmatprep.subr.bf16.mxu0 0
  %604 = vmatpush1.bf16.msra.mxu0 0
  %605 = vmatprep.subr.bf16.mxu0 0
  %606 = vmatpush1.bf16.msra.mxu0 0
  %607 = vmatprep.subr.bf16.mxu0 0
  %608 = vmatpush1.bf16.msra.mxu0 0
  %609 = vmatprep.subr.bf16.mxu0 0
  %610 = vmatpush1.bf16.msra.mxu0 0
  %611 = vmatprep.subr.bf16.mxu0 0
  %612 = vmatpush1.bf16.msra.mxu0 0
  %613 = vmatprep.mubr.bf16.mxu0 0
  %614 = vmatmul.mubr.bf16.gmra.mrb[0].mxu0 %v219
  %v615 = vpop.f32.mrb[0].mxu0
  %v616 = vadd.f32 0.0, %v615
  %v617 = vpop.f32.mrb[0].mxu0
  %v618 = vadd.f32 0.0, %v617
  %v619 = vpop.f32.mrb[0].mxu0
  %v620 = vpop.f32.mrb[0].mxu0
  %621 = vdwg.mxu0
  %622 = vmatprep.subr.bf16.mxu0 %v274
  %623 = vmatpush1.bf16.msra.mxu0 %v271
  %624 = vmatprep.subr.bf16.mxu0 0
  %625 = vmatpush1.bf16.msra.mxu0 0
  %626 = vmatprep.subr.bf16.mxu0 0
  %627 = vmatpush1.bf16.msra.mxu0 0
  %628 = vmatprep.subr.bf16.mxu0 0
  %629 = vmatpush1.bf16.msra.mxu0 0
  %630 = vmatprep.subr.bf16.mxu0 0
  %631 = vmatpush1.bf16.msra.mxu0 0
  %632 = vmatprep.subr.bf16.mxu0 0
  %633 = vmatpush1.bf16.msra.mxu0 0
  %634 = vmatprep.subr.bf16.mxu0 0
  %635 = vmatpush1.bf16.msra.mxu0 0
  %636 = vmatprep.subr.bf16.mxu0 0
  %637 = vmatpush1.bf16.msra.mxu0 0
  %638 = vmatprep.subr.bf16.mxu0 0
  %639 = vmatpush1.bf16.msra.mxu0 0
  %640 = vmatprep.subr.bf16.mxu0 0
  %641 = vmatpush1.bf16.msra.mxu0 0
  %642 = vmatprep.subr.bf16.mxu0 0
  %643 = vmatpush1.bf16.msra.mxu0 0
  %644 = vmatprep.subr.bf16.mxu0 0
  %645 = vmatpush1.bf16.msra.mxu0 0
  %646 = vmatprep.subr.bf16.mxu0 0
  %647 = vmatpush1.bf16.msra.mxu0 0
  %648 = vmatprep.subr.bf16.mxu0 0
  %649 = vmatpush1.bf16.msra.mxu0 0
  %650 = vmatprep.subr.bf16.mxu0 0
  %651 = vmatpush1.bf16.msra.mxu0 0
  %652 = vmatprep.subr.bf16.mxu0 0
  %653 = vmatpush1.bf16.msra.mxu0 0
  %654 = vmatprep.mubr.bf16.mxu0 0
  %655 = vmatmul.mubr.bf16.gmra.mrb[0].mxu0 %v219
  %v656 = vpop.f32.mrb[0].mxu0
  %v657 = vadd.f32 0.0, %v656
  %v658 = vpop.f32.mrb[0].mxu0
  %v659 = vadd.f32 0.0, %v658
  %v660 = vpop.f32.mrb[0].mxu0
  %v661 = vpop.f32.mrb[0].mxu0
  %662 = vdwg.mxu0
  %663 = vmatprep.subr.bf16.mxu0 %v280
  %664 = vmatpush1.bf16.msra.mxu0 %v277
  %665 = vmatprep.subr.bf16.mxu0 0
  %666 = vmatpush1.bf16.msra.mxu0 0
  %667 = vmatprep.subr.bf16.mxu0 0
  %668 = vmatpush1.bf16.msra.mxu0 0
  %669 = vmatprep.subr.bf16.mxu0 0
  %670 = vmatpush1.bf16.msra.mxu0 0
  %671 = vmatprep.subr.bf16.mxu0 0
  %672 = vmatpush1.bf16.msra.mxu0 0
  %673 = vmatprep.subr.bf16.mxu0 0
  %674 = vmatpush1.bf16.msra.mxu0 0
  %675 = vmatprep.subr.bf16.mxu0 0
  %676 = vmatpush1.bf16.msra.mxu0 0
  %677 = vmatprep.subr.bf16.mxu0 0
  %678 = vmatpush1.bf16.msra.mxu0 0
  %679 = vmatprep.subr.bf16.mxu0 0
  %680 = vmatpush1.bf16.msra.mxu0 0
  %681 = vmatprep.subr.bf16.mxu0 0
  %682 = vmatpush1.bf16.msra.mxu0 0
  %683 = vmatprep.subr.bf16.mxu0 0
  %684 = vmatpush1.bf16.msra.mxu0 0
  %685 = vmatprep.subr.bf16.mxu0 0
  %686 = vmatpush1.bf16.msra.mxu0 0
  %687 = vmatprep.subr.bf16.mxu0 0
  %688 = vmatpush1.bf16.msra.mxu0 0
  %689 = vmatprep.subr.bf16.mxu0 0
  %690 = vmatpush1.bf16.msra.mxu0 0
  %691 = vmatprep.subr.bf16.mxu0 0
  %692 = vmatpush1.bf16.msra.mxu0 0
  %693 = vmatprep.subr.bf16.mxu0 0
  %694 = vmatpush1.bf16.msra.mxu0 0
  %695 = vmatprep.mubr.bf16.mxu0 0
  %696 = vmatmul.mubr.bf16.gmra.mrb[0].mxu0 %v219
  %v697 = vpop.f32.mrb[0].mxu0
  %v698 = vadd.f32 0.0, %v697
  %v699 = vpop.f32.mrb[0].mxu0
  %v700 = vadd.f32 0.0, %v699
  %v701 = vpop.f32.mrb[0].mxu0
  %v702 = vpop.f32.mrb[0].mxu0
  %703 = vdwg.mxu0
  %704 = vmatprep.subr.bf16.mxu0 %v286
  %705 = vmatpush1.bf16.msra.mxu0 %v283
  %706 = vmatprep.subr.bf16.mxu0 0
  %707 = vmatpush1.bf16.msra.mxu0 0
  %708 = vmatprep.subr.bf16.mxu0 0
  %709 = vmatpush1.bf16.msra.mxu0 0
  %710 = vmatprep.subr.bf16.mxu0 0
  %711 = vmatpush1.bf16.msra.mxu0 0
  %712 = vmatprep.subr.bf16.mxu0 0
  %713 = vmatpush1.bf16.msra.mxu0 0
  %714 = vmatprep.subr.bf16.mxu0 0
  %715 = vmatpush1.bf16.msra.mxu0 0
  %716 = vmatprep.subr.bf16.mxu0 0
  %717 = vmatpush1.bf16.msra.mxu0 0
  %718 = vmatprep.subr.bf16.mxu0 0
  %719 = vmatpush1.bf16.msra.mxu0 0
  %720 = vmatprep.subr.bf16.mxu0 0
  %721 = vmatpush1.bf16.msra.mxu0 0
  %722 = vmatprep.subr.bf16.mxu0 0
  %723 = vmatpush1.bf16.msra.mxu0 0
  %724 = vmatprep.subr.bf16.mxu0 0
  %725 = vmatpush1.bf16.msra.mxu0 0
  %726 = vmatprep.subr.bf16.mxu0 0
  %727 = vmatpush1.bf16.msra.mxu0 0
  %728 = vmatprep.subr.bf16.mxu0 0
  %729 = vmatpush1.bf16.msra.mxu0 0
  %730 = vmatprep.subr.bf16.mxu0 0
  %731 = vmatpush1.bf16.msra.mxu0 0
  %732 = vmatprep.subr.bf16.mxu0 0
  %733 = vmatpush1.bf16.msra.mxu0 0
  %734 = vmatprep.subr.bf16.mxu0 0
  %735 = vmatpush1.bf16.msra.mxu0 0
  %736 = vmatprep.mubr.bf16.mxu0 0
  %737 = vmatmul.mubr.bf16.gmra.mrb[0].mxu0 %v219
  %v738 = vpop.f32.mrb[0].mxu0
  %v739 = vadd.f32 0.0, %v738
  %v740 = vpop.f32.mrb[0].mxu0
  %v741 = vadd.f32 0.0, %v740
  %v742 = vpop.f32.mrb[0].mxu0
  %v743 = vpop.f32.mrb[0].mxu0
  %744 = vdwg.mxu0
  %745 = vmatprep.subr.bf16.mxu0 %v292
  %746 = vmatpush1.bf16.msra.mxu0 %v289
  %747 = vmatprep.subr.bf16.mxu0 0
  %748 = vmatpush1.bf16.msra.mxu0 0
  %749 = vmatprep.subr.bf16.mxu0 0
  %750 = vmatpush1.bf16.msra.mxu0 0
  %751 = vmatprep.subr.bf16.mxu0 0
  %752 = vmatpush1.bf16.msra.mxu0 0
  %753 = vmatprep.subr.bf16.mxu0 0
  %754 = vmatpush1.bf16.msra.mxu0 0
  %755 = vmatprep.subr.bf16.mxu0 0
  %756 = vmatpush1.bf16.msra.mxu0 0
  %757 = vmatprep.subr.bf16.mxu0 0
  %758 = vmatpush1.bf16.msra.mxu0 0
  %759 = vmatprep.subr.bf16.mxu0 0
  %760 = vmatpush1.bf16.msra.mxu0 0
  %761 = vmatprep.subr.bf16.mxu0 0
  %762 = vmatpush1.bf16.msra.mxu0 0
  %763 = vmatprep.subr.bf16.mxu0 0
  %764 = vmatpush1.bf16.msra.mxu0 0
  %765 = vmatprep.subr.bf16.mxu0 0
  %766 = vmatpush1.bf16.msra.mxu0 0
  %767 = vmatprep.subr.bf16.mxu0 0
  %768 = vmatpush1.bf16.msra.mxu0 0
  %769 = vmatprep.subr.bf16.mxu0 0
  %770 = vmatpush1.bf16.msra.mxu0 0
  %771 = vmatprep.subr.bf16.mxu0 0
  %772 = vmatpush1.bf16.msra.mxu0 0
  %773 = vmatprep.subr.bf16.mxu0 0
  %774 = vmatpush1.bf16.msra.mxu0 0
  %775 = vmatprep.subr.bf16.mxu0 0
  %776 = vmatpush1.bf16.msra.mxu0 0
  %777 = vmatprep.mubr.bf16.mxu0 0
  %778 = vmatmul.mubr.bf16.gmra.mrb[0].mxu0 %v219
  %v779 = vpop.f32.mrb[0].mxu0
  %v780 = vadd.f32 0.0, %v779
  %v781 = vpop.f32.mrb[0].mxu0
  %v782 = vadd.f32 0.0, %v781
  %v783 = vpop.f32.mrb[0].mxu0
  %v784 = vpop.f32.mrb[0].mxu0
  %785 = vdwg.mxu0
  %v786 = vmul.f32 %v133, %v133
  %v787 = vmul.f32 %v134, %v134
  %v788 = vmul.f32 %v135, %v135
  %v789 = vmul.f32 %v136, %v136
  %v790 = vmul.f32 %v137, %v137
  %v791 = vmul.f32 %v138, %v138
  %v792 = vmul.f32 %v139, %v139
  %v793 = vmul.f32 %v140, %v140
  %v794 = vmul.f32 %v141, %v141
  %v795 = vmul.f32 %v142, %v142
  %v796 = vmul.f32 %v143, %v143
  %v797 = vmul.f32 %v144, %v144
  %v798 = vmul.f32 %v145, %v145
  %v799 = vmul.f32 %v146, %v146
  %v800 = vmul.f32 %v147, %v147
  %v801 = vmul.f32 %v148, %v148
  %v802 = vmul.f32 %v149, %v149
  %v803 = vmul.f32 %v150, %v150
  %v804 = vmul.f32 %v151, %v151
  %v805 = vmul.f32 %v152, %v152
  %v806 = vmul.f32 %v153, %v153
  %v807 = vmul.f32 %v154, %v154
  %v808 = vmul.f32 %v155, %v155
  %v809 = vmul.f32 %v156, %v156
  %v810 = vrot.slane %v786, 4
  %v811 = vadd.f32 %v786, %v810
  %v812 = vrot.slane %v811, 2
  %v813 = vadd.f32 %v811, %v812
  %v814 = vrot.slane %v813, 1
  %v815 = vadd.f32 %v813, %v814
  %v816 = vrot.slane %v787, 4
  %v817 = vadd.f32 %v787, %v816
  %v818 = vrot.slane %v817, 2
  %v819 = vadd.f32 %v817, %v818
  %v820 = vrot.slane %v819, 1
  %v821 = vadd.f32 %v819, %v820
  %v822 = vrot.slane %v788, 4
  %v823 = vadd.f32 %v788, %v822
  %v824 = vrot.slane %v823, 2
  %v825 = vadd.f32 %v823, %v824
  %v826 = vrot.slane %v825, 1
  %v827 = vadd.f32 %v825, %v826
  %v828 = vrot.slane %v789, 4
  %v829 = vadd.f32 %v789, %v828
  %v830 = vrot.slane %v829, 2
  %v831 = vadd.f32 %v829, %v830
  %v832 = vrot.slane %v831, 1
  %v833 = vadd.f32 %v831, %v832
  %v834 = vrot.slane %v790, 4
  %v835 = vadd.f32 %v790, %v834
  %v836 = vrot.slane %v835, 2
  %v837 = vadd.f32 %v835, %v836
  %v838 = vrot.slane %v837, 1
  %v839 = vadd.f32 %v837, %v838
  %v840 = vrot.slane %v791, 4
  %v841 = vadd.f32 %v791, %v840
  %v842 = vrot.slane %v841, 2
  %v843 = vadd.f32 %v841, %v842
  %v844 = vrot.slane %v843, 1
  %v845 = vadd.f32 %v843, %v844
  %v846 = vrot.slane %v792, 4
  %v847 = vadd.f32 %v792, %v846
  %v848 = vrot.slane %v847, 2
  %v849 = vadd.f32 %v847, %v848
  %v850 = vrot.slane %v849, 1
  %v851 = vadd.f32 %v849, %v850
  %v852 = vrot.slane %v793, 4
  %v853 = vadd.f32 %v793, %v852
  %v854 = vrot.slane %v853, 2
  %v855 = vadd.f32 %v853, %v854
  %v856 = vrot.slane %v855, 1
  %v857 = vadd.f32 %v855, %v856
  %v858 = vrot.slane %v794, 4
  %v859 = vadd.f32 %v794, %v858
  %v860 = vrot.slane %v859, 2
  %v861 = vadd.f32 %v859, %v860
  %v862 = vrot.slane %v861, 1
  %v863 = vadd.f32 %v861, %v862
  %v864 = vrot.slane %v795, 4
  %v865 = vadd.f32 %v795, %v864
  %v866 = vrot.slane %v865, 2
  %v867 = vadd.f32 %v865, %v866
  %v868 = vrot.slane %v867, 1
  %v869 = vadd.f32 %v867, %v868
  %v870 = vrot.slane %v796, 4
  %v871 = vadd.f32 %v796, %v870
  %v872 = vrot.slane %v871, 2
  %v873 = vadd.f32 %v871, %v872
  %v874 = vrot.slane %v873, 1
  %v875 = vadd.f32 %v873, %v874
  %v876 = vrot.slane %v797, 4
  %v877 = vadd.f32 %v797, %v876
  %v878 = vrot.slane %v877, 2
  %v879 = vadd.f32 %v877, %v878
  %v880 = vrot.slane %v879, 1
  %v881 = vadd.f32 %v879, %v880
  %v882 = vrot.slane %v798, 4
  %v883 = vadd.f32 %v798, %v882
  %v884 = vrot.slane %v883, 2
  %v885 = vadd.f32 %v883, %v884
  %v886 = vrot.slane %v885, 1
  %v887 = vadd.f32 %v885, %v886
  %v888 = vrot.slane %v799, 4
  %v889 = vadd.f32 %v799, %v888
  %v890 = vrot.slane %v889, 2
  %v891 = vadd.f32 %v889, %v890
  %v892 = vrot.slane %v891, 1
  %v893 = vadd.f32 %v891, %v892
  %v894 = vrot.slane %v800, 4
  %v895 = vadd.f32 %v800, %v894
  %v896 = vrot.slane %v895, 2
  %v897 = vadd.f32 %v895, %v896
  %v898 = vrot.slane %v897, 1
  %v899 = vadd.f32 %v897, %v898
  %v900 = vrot.slane %v801, 4
  %v901 = vadd.f32 %v801, %v900
  %v902 = vrot.slane %v901, 2
  %v903 = vadd.f32 %v901, %v902
  %v904 = vrot.slane %v903, 1
  %v905 = vadd.f32 %v903, %v904
  %v906 = vrot.slane %v802, 4
  %v907 = vadd.f32 %v802, %v906
  %v908 = vrot.slane %v907, 2
  %v909 = vadd.f32 %v907, %v908
  %v910 = vrot.slane %v909, 1
  %v911 = vadd.f32 %v909, %v910
  %v912 = vrot.slane %v803, 4
  %v913 = vadd.f32 %v803, %v912
  %v914 = vrot.slane %v913, 2
  %v915 = vadd.f32 %v913, %v914
  %v916 = vrot.slane %v915, 1
  %v917 = vadd.f32 %v915, %v916
  %v918 = vrot.slane %v804, 4
  %v919 = vadd.f32 %v804, %v918
  %v920 = vrot.slane %v919, 2
  %v921 = vadd.f32 %v919, %v920
  %v922 = vrot.slane %v921, 1
  %v923 = vadd.f32 %v921, %v922
  %v924 = vrot.slane %v805, 4
  %v925 = vadd.f32 %v805, %v924
  %v926 = vrot.slane %v925, 2
  %v927 = vadd.f32 %v925, %v926
  %v928 = vrot.slane %v927, 1
  %v929 = vadd.f32 %v927, %v928
  %v930 = vrot.slane %v806, 4
  %v931 = vadd.f32 %v806, %v930
  %v932 = vrot.slane %v931, 2
  %v933 = vadd.f32 %v931, %v932
  %v934 = vrot.slane %v933, 1
  %v935 = vadd.f32 %v933, %v934
  %v936 = vrot.slane %v807, 4
  %v937 = vadd.f32 %v807, %v936
  %v938 = vrot.slane %v937, 2
  %v939 = vadd.f32 %v937, %v938
  %v940 = vrot.slane %v939, 1
  %v941 = vadd.f32 %v939, %v940
  %v942 = vrot.slane %v808, 4
  %v943 = vadd.f32 %v808, %v942
  %v944 = vrot.slane %v943, 2
  %v945 = vadd.f32 %v943, %v944
  %v946 = vrot.slane %v945, 1
  %v947 = vadd.f32 %v945, %v946
  %v948 = vrot.slane %v809, 4
  %v949 = vadd.f32 %v809, %v948
  %v950 = vrot.slane %v949, 2
  %v951 = vadd.f32 %v949, %v950
  %v952 = vrot.slane %v951, 1
  %v953 = vadd.f32 %v951, %v952
  %v954 = vld [vmem:[%s1] sm:$0xff]
  %956 = vset.pattern.permute.xlu0 0
  %957 = vperm.xlu0 %956, %v954
  %v958 = vpop.permute.xlu0 %957
  %v960 = vadd.f32 %v958, %v815
  %v961 = vadd.f32 %v958, %v821
  %v962 = vadd.f32 %v958, %v827
  %v963 = vadd.f32 %v958, %v833
  %v964 = vadd.f32 %v958, %v839
  %v965 = vadd.f32 %v958, %v845
  %v966 = vadd.f32 %v958, %v851
  %v967 = vadd.f32 %v958, %v857
  %v968 = vadd.f32 %v958, %v863
  %v969 = vadd.f32 %v958, %v869
  %v970 = vadd.f32 %v958, %v875
  %v971 = vadd.f32 %v958, %v881
  %v972 = vadd.f32 %v958, %v887
  %v973 = vadd.f32 %v958, %v893
  %v974 = vadd.f32 %v958, %v899
  %v975 = vadd.f32 %v958, %v905
  %v976 = vadd.f32 %v958, %v911
  %v977 = vadd.f32 %v958, %v917
  %v978 = vadd.f32 %v958, %v923
  %v979 = vadd.f32 %v958, %v929
  %v980 = vadd.f32 %v958, %v935
  %v981 = vadd.f32 %v958, %v941
  %v982 = vadd.f32 %v958, %v947
  %v983 = vadd.f32 %v958, %v953
  %v984 = vmul.f32 %v329, 2.0
  %v985 = vmul.f32 %v331, 2.0
  %v986 = vmul.f32 %v370, 2.0
  %v987 = vmul.f32 %v372, 2.0
  %v988 = vmul.f32 %v411, 2.0
  %v989 = vmul.f32 %v413, 2.0
  %v990 = vmul.f32 %v452, 2.0
  %v991 = vmul.f32 %v454, 2.0
  %v992 = vmul.f32 %v493, 2.0
  %v993 = vmul.f32 %v495, 2.0
  %v994 = vmul.f32 %v534, 2.0
  %v995 = vmul.f32 %v536, 2.0
  %v996 = vmul.f32 %v575, 2.0
  %v997 = vmul.f32 %v577, 2.0
  %v998 = vmul.f32 %v616, 2.0
  %v999 = vmul.f32 %v618, 2.0
  %v1000 = vmul.f32 %v657, 2.0
  %v1001 = vmul.f32 %v659, 2.0
  %v1002 = vmul.f32 %v698, 2.0
  %v1003 = vmul.f32 %v700, 2.0
  %v1004 = vmul.f32 %v739, 2.0
  %v1005 = vmul.f32 %v741, 2.0
  %v1006 = vmul.f32 %v780, 2.0
  %v1007 = vmul.f32 %v782, 2.0
  %v1008 = vsub.f32 %v960, %v984
  %v1009 = vsub.f32 %v961, %v985
  %v1010 = vsub.f32 %v962, %v986
  %v1011 = vsub.f32 %v963, %v987
  %v1012 = vsub.f32 %v964, %v988
  %v1013 = vsub.f32 %v965, %v989
  %v1014 = vsub.f32 %v966, %v990
  %v1015 = vsub.f32 %v967, %v991
  %v1016 = vsub.f32 %v968, %v992
  %v1017 = vsub.f32 %v969, %v993
  %v1018 = vsub.f32 %v970, %v994
  %v1019 = vsub.f32 %v971, %v995
  %v1020 = vsub.f32 %v972, %v996
  %v1021 = vsub.f32 %v973, %v997
  %v1022 = vsub.f32 %v974, %v998
  %v1023 = vsub.f32 %v975, %v999
  %v1024 = vsub.f32 %v976, %v1000
  %v1025 = vsub.f32 %v977, %v1001
  %v1026 = vsub.f32 %v978, %v1002
  %v1027 = vsub.f32 %v979, %v1003
  %v1028 = vsub.f32 %v980, %v1004
  %v1029 = vsub.f32 %v981, %v1005
  %v1030 = vsub.f32 %v982, %v1006
  %v1031 = vsub.f32 %v983, %v1007
  %v1032 = vld [vmem:[%s2] sm:$0xff]
  %v1033 = vld [vmem:[%s58] sm:$0xff]
  %v1034 = vld [vmem:[%s58 + $0x8] sm:$0xff]
  %v1035 = vld [vmem:[%s58 + $0x10] sm:$0xff]
  %1036 = vset.pattern.permute.xlu0 0
  %1037 = vperm.xlu0 %1036, %v1032
  %v1038 = vpop.permute.xlu0 %1037
  %v1039 = vlaneseq
  %v1040 = vshrl.u32 %v1039, 7
  %v1041 = vsub.s32 0, %v1040
  %v1042 = vrot.slane %v1033, %v1041
  %v1043 = vlaneseq
  %v1044 = vshrl.u32 %v1043, 7
  %v1045 = vsub.s32 1, %v1044
  %v1046 = vrot.slane %v1033, %v1045
  %v1047 = vlaneseq
  %v1048 = vshrl.u32 %v1047, 7
  %v1049 = vsub.s32 2, %v1048
  %v1050 = vrot.slane %v1033, %v1049
  %v1051 = vlaneseq
  %v1052 = vshrl.u32 %v1051, 7
  %v1053 = vsub.s32 3, %v1052
  %v1054 = vrot.slane %v1033, %v1053
  %v1055 = vlaneseq
  %v1056 = vshrl.u32 %v1055, 7
  %v1057 = vsub.s32 4, %v1056
  %v1058 = vrot.slane %v1033, %v1057
  %v1059 = vlaneseq
  %v1060 = vshrl.u32 %v1059, 7
  %v1061 = vsub.s32 5, %v1060
  %v1062 = vrot.slane %v1033, %v1061
  %v1063 = vlaneseq
  %v1064 = vshrl.u32 %v1063, 7
  %v1065 = vsub.s32 6, %v1064
  %v1066 = vrot.slane %v1033, %v1065
  %v1067 = vlaneseq
  %v1068 = vshrl.u32 %v1067, 7
  %v1069 = vsub.s32 7, %v1068
  %v1070 = vrot.slane %v1033, %v1069
  %v1071 = vlaneseq
  %v1072 = vshrl.u32 %v1071, 7
  %v1073 = vsub.s32 0, %v1072
  %v1074 = vrot.slane %v1034, %v1073
  %v1075 = vlaneseq
  %v1076 = vshrl.u32 %v1075, 7
  %v1077 = vsub.s32 1, %v1076
  %v1078 = vrot.slane %v1034, %v1077
  %v1079 = vlaneseq
  %v1080 = vshrl.u32 %v1079, 7
  %v1081 = vsub.s32 2, %v1080
  %v1082 = vrot.slane %v1034, %v1081
  %v1083 = vlaneseq
  %v1084 = vshrl.u32 %v1083, 7
  %v1085 = vsub.s32 3, %v1084
  %v1086 = vrot.slane %v1034, %v1085
  %v1087 = vlaneseq
  %v1088 = vshrl.u32 %v1087, 7
  %v1089 = vsub.s32 4, %v1088
  %v1090 = vrot.slane %v1034, %v1089
  %v1091 = vlaneseq
  %v1092 = vshrl.u32 %v1091, 7
  %v1093 = vsub.s32 5, %v1092
  %v1094 = vrot.slane %v1034, %v1093
  %v1095 = vlaneseq
  %v1096 = vshrl.u32 %v1095, 7
  %v1097 = vsub.s32 6, %v1096
  %v1098 = vrot.slane %v1034, %v1097
  %v1099 = vlaneseq
  %v1100 = vshrl.u32 %v1099, 7
  %v1101 = vsub.s32 7, %v1100
  %v1102 = vrot.slane %v1034, %v1101
  %v1103 = vlaneseq
  %v1104 = vshrl.u32 %v1103, 7
  %v1105 = vsub.s32 0, %v1104
  %v1106 = vrot.slane %v1035, %v1105
  %v1107 = vlaneseq
  %v1108 = vshrl.u32 %v1107, 7
  %v1109 = vsub.s32 1, %v1108
  %v1110 = vrot.slane %v1035, %v1109
  %v1111 = vlaneseq
  %v1112 = vshrl.u32 %v1111, 7
  %v1113 = vsub.s32 2, %v1112
  %v1114 = vrot.slane %v1035, %v1113
  %v1115 = vlaneseq
  %v1116 = vshrl.u32 %v1115, 7
  %v1117 = vsub.s32 3, %v1116
  %v1118 = vrot.slane %v1035, %v1117
  %v1119 = vlaneseq
  %v1120 = vshrl.u32 %v1119, 7
  %v1121 = vsub.s32 4, %v1120
  %v1122 = vrot.slane %v1035, %v1121
  %v1123 = vlaneseq
  %v1124 = vshrl.u32 %v1123, 7
  %v1125 = vsub.s32 5, %v1124
  %v1126 = vrot.slane %v1035, %v1125
  %v1127 = vlaneseq
  %v1128 = vshrl.u32 %v1127, 7
  %v1129 = vsub.s32 6, %v1128
  %v1130 = vrot.slane %v1035, %v1129
  %v1131 = vlaneseq
  %v1132 = vshrl.u32 %v1131, 7
  %v1133 = vsub.s32 7, %v1132
  %v1134 = vrot.slane %v1035, %v1133
  %v1135 = vand.u32 %v1038, %v1042
  %v1136 = vand.u32 %v1038, %v1046
  %v1137 = vand.u32 %v1038, %v1050
  %v1138 = vand.u32 %v1038, %v1054
  %v1139 = vand.u32 %v1038, %v1058
  %v1140 = vand.u32 %v1038, %v1062
  %v1141 = vand.u32 %v1038, %v1066
  %v1142 = vand.u32 %v1038, %v1070
  %v1143 = vand.u32 %v1038, %v1074
  %v1144 = vand.u32 %v1038, %v1078
  %v1145 = vand.u32 %v1038, %v1082
  %v1146 = vand.u32 %v1038, %v1086
  %v1147 = vand.u32 %v1038, %v1090
  %v1148 = vand.u32 %v1038, %v1094
  %v1149 = vand.u32 %v1038, %v1098
  %v1150 = vand.u32 %v1038, %v1102
  %v1151 = vand.u32 %v1038, %v1106
  %v1152 = vand.u32 %v1038, %v1110
  %v1153 = vand.u32 %v1038, %v1114
  %v1154 = vand.u32 %v1038, %v1118
  %v1155 = vand.u32 %v1038, %v1122
  %v1156 = vand.u32 %v1038, %v1126
  %v1157 = vand.u32 %v1038, %v1130
  %v1158 = vand.u32 %v1038, %v1134
  %vm1159 = vcmp.eq.s32.totalorder %v1135, 0
  %vm1160 = vcmp.eq.s32.totalorder %v1136, 0
  %vm1161 = vcmp.eq.s32.totalorder %v1137, 0
  %vm1162 = vcmp.eq.s32.totalorder %v1138, 0
  %vm1163 = vcmp.eq.s32.totalorder %v1139, 0
  %vm1164 = vcmp.eq.s32.totalorder %v1140, 0
  %vm1165 = vcmp.eq.s32.totalorder %v1141, 0
  %vm1166 = vcmp.eq.s32.totalorder %v1142, 0
  %vm1167 = vcmp.eq.s32.totalorder %v1143, 0
  %vm1168 = vcmp.eq.s32.totalorder %v1144, 0
  %vm1169 = vcmp.eq.s32.totalorder %v1145, 0
  %vm1170 = vcmp.eq.s32.totalorder %v1146, 0
  %vm1171 = vcmp.eq.s32.totalorder %v1147, 0
  %vm1172 = vcmp.eq.s32.totalorder %v1148, 0
  %vm1173 = vcmp.eq.s32.totalorder %v1149, 0
  %vm1174 = vcmp.eq.s32.totalorder %v1150, 0
  %vm1175 = vcmp.eq.s32.totalorder %v1151, 0
  %vm1176 = vcmp.eq.s32.totalorder %v1152, 0
  %vm1177 = vcmp.eq.s32.totalorder %v1153, 0
  %vm1178 = vcmp.eq.s32.totalorder %v1154, 0
  %vm1179 = vcmp.eq.s32.totalorder %v1155, 0
  %vm1180 = vcmp.eq.s32.totalorder %v1156, 0
  %vm1181 = vcmp.eq.s32.totalorder %v1157, 0
  %vm1182 = vcmp.eq.s32.totalorder %v1158, 0
  %v1183 = vsub.f32 16.0, %v1008
  %v1184 = vsub.f32 16.0, %v1009
  %v1185 = vsub.f32 16.0, %v1010
  %v1186 = vsub.f32 16.0, %v1011
  %v1187 = vsub.f32 16.0, %v1012
  %v1188 = vsub.f32 16.0, %v1013
  %v1189 = vsub.f32 16.0, %v1014
  %v1190 = vsub.f32 16.0, %v1015
  %v1191 = vsub.f32 16.0, %v1016
  %v1192 = vsub.f32 16.0, %v1017
  %v1193 = vsub.f32 16.0, %v1018
  %v1194 = vsub.f32 16.0, %v1019
  %v1195 = vsub.f32 16.0, %v1020
  %v1196 = vsub.f32 16.0, %v1021
  %v1197 = vsub.f32 16.0, %v1022
  %v1198 = vsub.f32 16.0, %v1023
  %v1199 = vsub.f32 16.0, %v1024
  %v1200 = vsub.f32 16.0, %v1025
  %v1201 = vsub.f32 16.0, %v1026
  %v1202 = vsub.f32 16.0, %v1027
  %v1203 = vsub.f32 16.0, %v1028
  %v1204 = vsub.f32 16.0, %v1029
  %v1205 = vsub.f32 16.0, %v1030
  %v1206 = vsub.f32 16.0, %v1031
  %v1207 = vmax.f32 %v1183, 0.0
  %v1208 = vmax.f32 %v1184, 0.0
  %v1209 = vmax.f32 %v1185, 0.0
  %v1210 = vmax.f32 %v1186, 0.0
  %v1211 = vmax.f32 %v1187, 0.0
  %v1212 = vmax.f32 %v1188, 0.0
  %v1213 = vmax.f32 %v1189, 0.0
  %v1214 = vmax.f32 %v1190, 0.0
  %v1215 = vmax.f32 %v1191, 0.0
  %v1216 = vmax.f32 %v1192, 0.0
  %v1217 = vmax.f32 %v1193, 0.0
  %v1218 = vmax.f32 %v1194, 0.0
  %v1219 = vmax.f32 %v1195, 0.0
  %v1220 = vmax.f32 %v1196, 0.0
  %v1221 = vmax.f32 %v1197, 0.0
  %v1222 = vmax.f32 %v1198, 0.0
  %v1223 = vmax.f32 %v1199, 0.0
  %v1224 = vmax.f32 %v1200, 0.0
  %v1225 = vmax.f32 %v1201, 0.0
  %v1226 = vmax.f32 %v1202, 0.0
  %v1227 = vmax.f32 %v1203, 0.0
  %v1228 = vmax.f32 %v1204, 0.0
  %v1229 = vmax.f32 %v1205, 0.0
  %v1230 = vmax.f32 %v1206, 0.0
  %v1231 = vsel %vm1159, %v1207, %v1008
  %v1232 = vsel %vm1160, %v1208, %v1009
  %v1233 = vsel %vm1161, %v1209, %v1010
  %v1234 = vsel %vm1162, %v1210, %v1011
  %v1235 = vsel %vm1163, %v1211, %v1012
  %v1236 = vsel %vm1164, %v1212, %v1013
  %v1237 = vsel %vm1165, %v1213, %v1014
  %v1238 = vsel %vm1166, %v1214, %v1015
  %v1239 = vsel %vm1167, %v1215, %v1016
  %v1240 = vsel %vm1168, %v1216, %v1017
  %v1241 = vsel %vm1169, %v1217, %v1018
  %v1242 = vsel %vm1170, %v1218, %v1019
  %v1243 = vsel %vm1171, %v1219, %v1020
  %v1244 = vsel %vm1172, %v1220, %v1021
  %v1245 = vsel %vm1173, %v1221, %v1022
  %v1246 = vsel %vm1174, %v1222, %v1023
  %v1247 = vsel %vm1175, %v1223, %v1024
  %v1248 = vsel %vm1176, %v1224, %v1025
  %v1249 = vsel %vm1177, %v1225, %v1026
  %v1250 = vsel %vm1178, %v1226, %v1027
  %v1251 = vsel %vm1179, %v1227, %v1028
  %v1252 = vsel %vm1180, %v1228, %v1029
  %v1253 = vsel %vm1181, %v1229, %v1030
  %v1254 = vsel %vm1182, %v1230, %v1031
  %v1255 = vmul.f32 %v1231, 0.5
  %v1256 = vmul.f32 %v1232, 0.5
  %v1257 = vmul.f32 %v1233, 0.5
  %v1258 = vmul.f32 %v1234, 0.5
  %v1259 = vmul.f32 %v1235, 0.5
  %v1260 = vmul.f32 %v1236, 0.5
  %v1261 = vmul.f32 %v1237, 0.5
  %v1262 = vmul.f32 %v1238, 0.5
  %v1263 = vmul.f32 %v1239, 0.5
  %v1264 = vmul.f32 %v1240, 0.5
  %v1265 = vmul.f32 %v1241, 0.5
  %v1266 = vmul.f32 %v1242, 0.5
  %v1267 = vmul.f32 %v1243, 0.5
  %v1268 = vmul.f32 %v1244, 0.5
  %v1269 = vmul.f32 %v1245, 0.5
  %v1270 = vmul.f32 %v1246, 0.5
  %v1271 = vmul.f32 %v1247, 0.5
  %v1272 = vmul.f32 %v1248, 0.5
  %v1273 = vmul.f32 %v1249, 0.5
  %v1274 = vmul.f32 %v1250, 0.5
  %v1275 = vmul.f32 %v1251, 0.5
  %v1276 = vmul.f32 %v1252, 0.5
  %v1277 = vmul.f32 %v1253, 0.5
  %v1278 = vmul.f32 %v1254, 0.5
  %v1279 = vld [vmem:[#allocation2] sm:$0xff]
  %v1280 = vld [vmem:[#allocation2 + $0x8] sm:$0xff]
  %v1281 = vld [vmem:[#allocation2 + $0x10] sm:$0xff]
  %v1282 = vld [vmem:[#allocation2 + $0x18] sm:$0xff]
  %v1283 = vld [vmem:[#allocation2 + $0x20] sm:$0xff]
  %v1284 = vld [vmem:[#allocation2 + $0x28] sm:$0xff]
  %v1285 = vld [vmem:[#allocation2 + $0x30] sm:$0xff]
  %v1286 = vld [vmem:[#allocation2 + $0x38] sm:$0xff]
  %v1287 = vld [vmem:[#allocation2 + $0x40] sm:$0xff]
  %v1288 = vld [vmem:[#allocation2 + $0x48] sm:$0xff]
  %v1289 = vld [vmem:[#allocation2 + $0x50] sm:$0xff]
  %v1290 = vld [vmem:[#allocation2 + $0x58] sm:$0xff]
  %v1291 = vld [vmem:[#allocation2 + $0x60] sm:$0xff]
  %v1292 = vld [vmem:[#allocation2 + $0x68] sm:$0xff]
  %v1293 = vld [vmem:[#allocation2 + $0x70] sm:$0xff]
  %v1294 = vld [vmem:[#allocation2 + $0x78] sm:$0xff]
  %v1295 = vld [vmem:[#allocation2 + $0x80] sm:$0xff]
  %v1296 = vld [vmem:[#allocation2 + $0x88] sm:$0xff]
  %v1297 = vld [vmem:[#allocation2 + $0x90] sm:$0xff]
  %v1298 = vld [vmem:[#allocation2 + $0x98] sm:$0xff]
  %v1299 = vld [vmem:[#allocation2 + $0xa0] sm:$0xff]
  %v1300 = vld [vmem:[#allocation2 + $0xa8] sm:$0xff]
  %v1301 = vld [vmem:[#allocation2 + $0xb0] sm:$0xff]
  %v1302 = vld [vmem:[#allocation2 + $0xb8] sm:$0xff]
  %v1303 = vadd.f32 %v1279, %v1255
  %v1304 = vadd.f32 %v1280, %v1256
  %v1305 = vadd.f32 %v1281, %v1257
  %v1306 = vadd.f32 %v1282, %v1258
  %v1307 = vadd.f32 %v1283, %v1259
  %v1308 = vadd.f32 %v1284, %v1260
  %v1309 = vadd.f32 %v1285, %v1261
  %v1310 = vadd.f32 %v1286, %v1262
  %v1311 = vadd.f32 %v1287, %v1263
  %v1312 = vadd.f32 %v1288, %v1264
  %v1313 = vadd.f32 %v1289, %v1265
  %v1314 = vadd.f32 %v1290, %v1266
  %v1315 = vadd.f32 %v1291, %v1267
  %v1316 = vadd.f32 %v1292, %v1268
  %v1317 = vadd.f32 %v1293, %v1269
  %v1318 = vadd.f32 %v1294, %v1270
  %v1319 = vadd.f32 %v1295, %v1271
  %v1320 = vadd.f32 %v1296, %v1272
  %v1321 = vadd.f32 %v1297, %v1273
  %v1322 = vadd.f32 %v1298, %v1274
  %v1323 = vadd.f32 %v1299, %v1275
  %v1324 = vadd.f32 %v1300, %v1276
  %v1325 = vadd.f32 %v1301, %v1277
  %v1326 = vadd.f32 %v1302, %v1278
  %1327 = vst [vmem:[#allocation2] sm:$0xff] %v1303
  %1328 = vst [vmem:[#allocation2 + $0x8] sm:$0xff] %v1304
  %1329 = vst [vmem:[#allocation2 + $0x10] sm:$0xff] %v1305
  %1330 = vst [vmem:[#allocation2 + $0x18] sm:$0xff] %v1306
  %1331 = vst [vmem:[#allocation2 + $0x20] sm:$0xff] %v1307
  %1332 = vst [vmem:[#allocation2 + $0x28] sm:$0xff] %v1308
  %1333 = vst [vmem:[#allocation2 + $0x30] sm:$0xff] %v1309
  %1334 = vst [vmem:[#allocation2 + $0x38] sm:$0xff] %v1310
  %1335 = vst [vmem:[#allocation2 + $0x40] sm:$0xff] %v1311
  %1336 = vst [vmem:[#allocation2 + $0x48] sm:$0xff] %v1312
  %1337 = vst [vmem:[#allocation2 + $0x50] sm:$0xff] %v1313
  %1338 = vst [vmem:[#allocation2 + $0x58] sm:$0xff] %v1314
  %1339 = vst [vmem:[#allocation2 + $0x60] sm:$0xff] %v1315
  %1340 = vst [vmem:[#allocation2 + $0x68] sm:$0xff] %v1316
  %1341 = vst [vmem:[#allocation2 + $0x70] sm:$0xff] %v1317
  %1342 = vst [vmem:[#allocation2 + $0x78] sm:$0xff] %v1318
  %1343 = vst [vmem:[#allocation2 + $0x80] sm:$0xff] %v1319
  %1344 = vst [vmem:[#allocation2 + $0x88] sm:$0xff] %v1320
  %1345 = vst [vmem:[#allocation2 + $0x90] sm:$0xff] %v1321
  %1346 = vst [vmem:[#allocation2 + $0x98] sm:$0xff] %v1322
  %1347 = vst [vmem:[#allocation2 + $0xa0] sm:$0xff] %v1323
  %1348 = vst [vmem:[#allocation2 + $0xa8] sm:$0xff] %v1324
  %1349 = vst [vmem:[#allocation2 + $0xb0] sm:$0xff] %v1325
  %1350 = vst [vmem:[#allocation2 + $0xb8] sm:$0xff] %v1326
  // Predicated region
  $region26: #{forward.1} parent=0 // pred_check
    %p1351 = pneg %p62
  $region27: #{forward.1} parent=0 // pred_check_branch
    %1353 = sbr.rel (%p1351) target = $region29
  $region28: #{forward.1} parent=0 // pred_region
    %v1354 = vld [vmem:[#allocation2] sm:$0xff]
    %v1355 = vld [vmem:[#allocation2 + $0x8] sm:$0xff]
    %v1356 = vld [vmem:[#allocation2 + $0x10] sm:$0xff]
    %v1357 = vld [vmem:[#allocation2 + $0x18] sm:$0xff]
    %v1358 = vld [vmem:[#allocation2 + $0x20] sm:$0xff]
    %v1359 = vld [vmem:[#allocation2 + $0x28] sm:$0xff]
    %v1360 = vld [vmem:[#allocation2 + $0x30] sm:$0xff]
    %v1361 = vld [vmem:[#allocation2 + $0x38] sm:$0xff]
    %v1362 = vld [vmem:[#allocation2 + $0x40] sm:$0xff]
    %v1363 = vld [vmem:[#allocation2 + $0x48] sm:$0xff]
    %v1364 = vld [vmem:[#allocation2 + $0x50] sm:$0xff]
    %v1365 = vld [vmem:[#allocation2 + $0x58] sm:$0xff]
    %v1366 = vld [vmem:[#allocation2 + $0x60] sm:$0xff]
    %v1367 = vld [vmem:[#allocation2 + $0x68] sm:$0xff]
    %v1368 = vld [vmem:[#allocation2 + $0x70] sm:$0xff]
    %v1369 = vld [vmem:[#allocation2 + $0x78] sm:$0xff]
    %v1370 = vld [vmem:[#allocation2 + $0x80] sm:$0xff]
    %v1371 = vld [vmem:[#allocation2 + $0x88] sm:$0xff]
    %v1372 = vld [vmem:[#allocation2 + $0x90] sm:$0xff]
    %v1373 = vld [vmem:[#allocation2 + $0x98] sm:$0xff]
    %v1374 = vld [vmem:[#allocation2 + $0xa0] sm:$0xff]
    %v1375 = vld [vmem:[#allocation2 + $0xa8] sm:$0xff]
    %v1376 = vld [vmem:[#allocation2 + $0xb0] sm:$0xff]
    %v1377 = vld [vmem:[#allocation2 + $0xb8] sm:$0xff]
    %v1378 = vadd.f32 %v1354, %v1355
    %v1379 = vadd.f32 %v1378, %v1356
    %v1380 = vadd.f32 %v1379, %v1357
    %v1381 = vadd.f32 %v1380, %v1358
    %v1382 = vadd.f32 %v1381, %v1359
    %v1383 = vadd.f32 %v1382, %v1360
    %v1384 = vadd.f32 %v1383, %v1361
    %v1385 = vadd.f32 %v1384, %v1362
    %v1386 = vadd.f32 %v1385, %v1363
    %v1387 = vadd.f32 %v1386, %v1364
    %v1388 = vadd.f32 %v1387, %v1365
    %v1389 = vadd.f32 %v1388, %v1366
    %v1390 = vadd.f32 %v1389, %v1367
    %v1391 = vadd.f32 %v1390, %v1368
    %v1392 = vadd.f32 %v1391, %v1369
    %v1393 = vadd.f32 %v1392, %v1370
    %v1394 = vadd.f32 %v1393, %v1371
    %v1395 = vadd.f32 %v1394, %v1372
    %v1396 = vadd.f32 %v1395, %v1373
    %v1397 = vadd.f32 %v1396, %v1374
    %v1398 = vadd.f32 %v1397, %v1375
    %v1399 = vadd.f32 %v1398, %v1376
    %v1400 = vadd.f32 %v1399, %v1377
    %1401 = vadd.xlane.f32.xlu0 %v1400
    %v1402 = vpop.xlane.xlu0 %1401
    %v1403 = vrot.slane %v1402, 4
    %v1404 = vadd.f32 %v1402, %v1403
    %v1405 = vrot.slane %v1404, 2
    %v1406 = vadd.f32 %v1404, %v1405
    %v1407 = vrot.slane %v1406, 1
    %v1408 = vadd.f32 %v1406, %v1407
    %s1409 = vtos %v1408
    %v1410 = vstv %s1409
    %1411 = vst [vmem:[%s5] sm:$0xff] %v1410
  $region29: #{forward.1} parent=0 // pred_fallthru
    _
  // Predicated region
  $region30: #{forward.1} parent=0 // pred_check
    _
  $region31: #{forward.1} parent=0 // pred_check_branch
    %1413 = sbr.rel (0) target = $region33
  $region32: #{forward.1} parent=0 // pred_region
    _
  $region33: #{forward.1} parent=0 // pred_fallthru
    _
  // Predicated region
  $region34: #{forward.1} parent=0 // pred_check
    _
  $region35: #{forward.1} parent=0 // pred_check_branch
    %1415 = sbr.rel (0) target = $region37
  $region36: #{forward.1} parent=0 // pred_region
    _
  $region37: #{forward.1} parent=0 // pred_fallthru
    _

</llo_original>
